<compile_context>
chip_gen: v6e
topology: v6e:2x2x1
jax: 0.10.0
libtpu: 0.0.40
codegen_flags: <defaults>
</compile_context>

<pallas_src>
import functools

import jax
import jax.numpy as jnp
import numpy as np
from jax import lax
from jax.experimental import pallas as pl
from jax.experimental.pallas import tpu as pltpu

EPS = 1e-5  # matches LayerNorm(eps=1e-05)


def _gelu_tanh(x):
    # tanh approximation of GELU (|err| vs erf-GELU ~3e-3); runs on the EUP.
    c = 0.7978845608028654  # sqrt(2/pi)
    return 0.5 * x * (1.0 + jnp.tanh(c * (x + 0.044715 * (x * x * x))))


def _aligned(idx, tile):
    # alignment hint for dynamic slice starts (aligned vector loads/stores)
    return pl.multiple_of(idx, 128) if tile % 128 == 0 else idx


# ---------------------------------------------------------------------------
# Per-tile compute helpers (shared by the fused kernel and the two-phase path)
# All tensors are channels-first: (channels, pixels) with pixels on the lanes.
# ---------------------------------------------------------------------------
def _kv_partial_a(xs, wkv, bkv, lnw, lnb, pm, pv):
    """xs: (C, tn) pixel tile.  Returns the (C, C) f32 partial sum of K @ V^T
    over this tile (per-head mask and 1/(H*W) are applied at finalize)."""
    C = xs.shape[0]
    xb = xs.astype(jnp.bfloat16)
    # packed k|v projection: (2C, C) @ (C, tn) -> lane-dense (2C, tn), f32 acc
    kv = jnp.dot(wkv, xb, preferred_element_type=jnp.float32) + bkv
    # grouped LayerNorm stats via single fused (2C, 2C) group matrices
    mean = jnp.dot(pm, kv.astype(jnp.bfloat16), preferred_element_type=jnp.float32)
    d = kv - mean
    var = jnp.dot(pv, (d * d).astype(jnp.bfloat16),
                  preferred_element_type=jnp.float32)       # unbiased (ddof=1)
    inv = pl.reciprocal(jnp.sqrt(var) + EPS, approx=True)   # EUP slot
    kvn = lnw * (d * inv) + lnb                             # (2C, tn) f32
    k = kvn[:C, :].astype(jnp.bfloat16)
    v = kvn[C:, :].astype(jnp.bfloat16)
    # A += K @ V^T: contraction over the long pixel axis (MXU-friendly)
    return lax.dot_general(k, v, (((1,), (1,)), ((), ())),
                           preferred_element_type=jnp.float32)


def _fold_q_into_a(a_raw, mask, wq, bq):
    """a_raw: accumulated (C, C) K V^T.  mask carries the per-head block
    diagonal and the 1/(H*W) factor.  Returns A' = A^T Wq and b' = A^T bq so
    the output path computes attn = A' @ x + b' (wq folded into A)."""
    a = (a_raw * mask).astype(jnp.bfloat16)
    aq = lax.dot_general(a, wq, (((0,), (0,)), ((), ())),
                         preferred_element_type=jnp.float32)            # (C, C)
    bq2 = lax.dot_general(a, bq.astype(jnp.bfloat16), (((0,), (0,)), ((), ())),
                          preferred_element_type=jnp.float32)           # (C, 1)
    return aq, bq2


def _out_tile(xs, aq, bq2, wo1, bo1, wo2, bo2):
    """xs: (C, tn) pixel tile.  out = Wo2 GELU(Wo1 (A'x + b' + x) + bo1) + bo2 + x."""
    xb = xs.astype(jnp.bfloat16)
    xf = xs.astype(jnp.float32)
    attn = jnp.dot(aq.astype(jnp.bfloat16), xb,
                   preferred_element_type=jnp.float32) + bq2
    ret = attn + xf
    h1 = jnp.dot(wo1, ret.astype(jnp.bfloat16),
                 preferred_element_type=jnp.float32) + bo1
    h1 = _gelu_tanh(h1)
    out = jnp.dot(wo2, h1.astype(jnp.bfloat16),
                  preferred_element_type=jnp.float32) + bo2 + xf
    return out


# ---------------------------------------------------------------------------
# Fused single-pass kernel: grid = (B,), per-batch (C, N) slab resident in VMEM
# ---------------------------------------------------------------------------
def _fused_kernel(x_ref, wkv_ref, bkv_ref, lnw_ref, lnb_ref, pm_ref, pv_ref,
                  mask_ref, wq_ref, bq_ref, wo1_ref, bo1_ref, wo2_ref, bo2_ref,
                  o_ref, a_scr, *, tn, n_full, rem):
    # ---- phase 1: A = sum over pixel tiles of K V^T (VMEM scratch) ----
    a_scr[...] = jnp.zeros_like(a_scr)

    def p1_body(i, carry):
        start = _aligned(i * tn, tn)
        xs = x_ref[0, :, pl.ds(start, tn)]
        a_scr[...] += _kv_partial_a(xs, wkv_ref[...], bkv_ref[...], lnw_ref[...],
                                    lnb_ref[...], pm_ref[...], pv_ref[...])
        return carry

    lax.fori_loop(0, n_full, p1_body, 0)

    if rem:  # static tail chunk (N not a multiple of the inner tile)
        xs = x_ref[0, :, pl.ds(n_full * tn, rem)]
        a_scr[...] += _kv_partial_a(xs, wkv_ref[...], bkv_ref[...], lnw_ref[...],
                                    lnb_ref[...], pm_ref[...], pv_ref[...])

    # ---- finalize: mask + 1/(H*W), fold the q projection into A ----
    aq, bq2 = _fold_q_into_a(a_scr[...], mask_ref[...], wq_ref[...], bq_ref[...])
    aq = aq.astype(jnp.bfloat16)

    # ---- phase 2: attention + residual + MLP, lane-dense stores ----
    def p2_body(i, carry):
        start = _aligned(i * tn, tn)
        xs = x_ref[0, :, pl.ds(start, tn)]
        out = _out_tile(xs, aq, bq2, wo1_ref[...], bo1_ref[...],
                        wo2_ref[...], bo2_ref[...])
        o_ref[0, :, pl.ds(start, tn)] = out.astype(o_ref.dtype)
        return carry

    lax.fori_loop(0, n_full, p2_body, 0)

    if rem:
        start = n_full * tn
        xs = x_ref[0, :, pl.ds(start, rem)]
        out = _out_tile(xs, aq, bq2, wo1_ref[...], bo1_ref[...],
                        wo2_ref[...], bo2_ref[...])
        o_ref[0, :, pl.ds(start, rem)] = out.astype(o_ref.dtype)


# ---------------------------------------------------------------------------
# Two-phase fallback (streamed pixel tiles) for slabs that exceed VMEM budget
# ---------------------------------------------------------------------------
def _kv_stats_kernel(x_ref, wkv_ref, bkv_ref, lnw_ref, lnb_ref, pm_ref, pv_ref,
                     mask_ref, wq_ref, bq_ref, aq_ref, bq2_ref, a_scr):
    n = pl.program_id(1)

    @pl.when(n == 0)
    def _():
        a_scr[...] = jnp.zeros_like(a_scr)

    a_scr[...] += _kv_partial_a(x_ref[0], wkv_ref[...], bkv_ref[...],
                                lnw_ref[...], lnb_ref[...], pm_ref[...],
                                pv_ref[...])

    @pl.when(n == pl.num_programs(1) - 1)
    def _():
        aq, bq2 = _fold_q_into_a(a_scr[...], mask_ref[...], wq_ref[...],
                                 bq_ref[...])
        aq_ref[0] = aq.astype(aq_ref.dtype)
        bq2_ref[0] = bq2


def _attn_mlp_kernel(x_ref, aq_ref, bq2_ref, wo1_ref, bo1_ref, wo2_ref,
                     bo2_ref, o_ref):
    out = _out_tile(x_ref[0], aq_ref[0], bq2_ref[0],
                    wo1_ref[...], bo1_ref[...], wo2_ref[...], bo2_ref[...])
    o_ref[0] = out.astype(o_ref.dtype)


# ---------------------------------------------------------------------------
# Wrapper: parameter plumbing, tiling / VMEM budgeting, pallas_call(s)
# ---------------------------------------------------------------------------
def _prep_params(params, C, heads, N):
    headc = C // heads
    f32 = jnp.float32

    # torch 1x1-conv weight (3C_out, C_in); output channel o -> (head, part, d)
    w_qkv = jnp.asarray(params["w_qkv"], f32).reshape(heads, 3, headc, C)
    b_qkv = jnp.asarray(params["b_qkv"], f32).reshape(heads, 3, headc)
    wq = w_qkv[:, 0].reshape(C, C)
    wk = w_qkv[:, 1].reshape(C, C)
    wv = w_qkv[:, 2].reshape(C, C)
    bq = b_qkv[:, 0].reshape(C, 1)
    bk = b_qkv[:, 1].reshape(C, 1)
    bv = b_qkv[:, 2].reshape(C, 1)

    # packed k|v projection (one (2C, C) bf16 weight) + packed LN params
    wkv = jnp.concatenate([wk, wv], axis=0).astype(jnp.bfloat16)   # (2C, C)
    bkv = jnp.concatenate([bk, bv], axis=0)                        # (2C, 1)
    lnw = jnp.concatenate([jnp.asarray(params["kln_w"], f32).reshape(C, 1),
                           jnp.asarray(params["vln_w"], f32).reshape(C, 1)], 0)
    lnb = jnp.concatenate([jnp.asarray(params["kln_b"], f32).reshape(C, 1),
                           jnp.asarray(params["vln_b"], f32).reshape(C, 1)], 0)

    # fused group-stat matrices over 2*heads groups of headc channels
    grp2 = (jnp.arange(2 * C)[:, None] // headc
            == jnp.arange(2 * C)[None, :] // headc).astype(f32)    # (2C, 2C)
    pm = (grp2 / headc).astype(jnp.bfloat16)
    pv = (grp2 / (headc - 1)).astype(jnp.bfloat16)

    # per-head block-diagonal mask with 1/(H*W) folded in
    grp1 = (jnp.arange(C)[:, None] // headc
            == jnp.arange(C)[None, :] // headc).astype(f32)        # (C, C)
    mask = grp1 * (1.0 / N)

    return dict(
        wkv=wkv, bkv=bkv, lnw=lnw, lnb=lnb, pm=pm, pv=pv, mask=mask,
        wq=wq.astype(jnp.bfloat16), bq=bq,
        wo1=jnp.asarray(params["w_o1"], f32).astype(jnp.bfloat16),
        bo1=jnp.asarray(params["b_o1"], f32).reshape(C, 1),
        wo2=jnp.asarray(params["w_o2"], f32).astype(jnp.bfloat16),
        bo2=jnp.asarray(params["b_o2"], f32).reshape(C, 1),
    )


def _inner_tile(n, cap=2048):
    """Inner loop chunk for the fused kernel (bounds f32 intermediates)."""
    if n <= cap:
        return n, 1, 0
    return cap, n // cap, n % cap


def _divisor_tile(n, cap=8192):
    """Largest lane-dense tile (pow2 >= 128) that divides n, for streaming."""
    t = cap
    while t >= 128:
        if t <= n and n % t == 0:
            return t
        t //= 2
    return n if n <= cap else None


def _vmem_budget():
    # Size the VMEM limit from the hardware (v7x: 64 MiB, v5e/v6e: 128 MiB);
    # fall back to a v7x-safe value if the query is unavailable.
    try:
        return int(pltpu.get_tpu_info().vmem_capacity_bytes * 3 // 4)
    except Exception:
        return 48 * 1024 * 1024


def simple_attn_forward(x_nchw, params, heads, *, out_dtype=jnp.bfloat16,
                        force_two_phase=False):
    B, C, H, W = x_nchw.shape
    N = H * W
    headc = C // heads
    assert headc > 1, "headc must be > 1 (unbiased std divides by headc-1)"

    # channels-first native layout; pure reshape, NO transpose / extra HBM pass
    x = x_nchw.reshape(B, C, N)

    w = _prep_params(params, C, heads, N)
    weights_p1 = (w["wkv"], w["bkv"], w["lnw"], w["lnb"], w["pm"], w["pv"],
                  w["mask"], w["wq"], w["bq"])
    weights_p2 = (w["wo1"], w["bo1"], w["wo2"], w["bo2"])

    budget = _vmem_budget()
    slab_in = C * N * x.dtype.itemsize
    slab_out = C * N * jnp.dtype(out_dtype).itemsize
    # x/out slabs double-buffered across the batch axis + weights/intermediates
    need_fused = 2 * (slab_in + slab_out) + (8 << 20)
    use_fused = (not force_two_phase) and (need_fused <= budget)

    if use_fused:
        # ---- fused single pass: x read from HBM once, A kept in VMEM scratch
        tn, n_full, rem = _inner_tile(N)
        all_w = weights_p1 + weights_p2

        def wspec(arr):
            return pl.BlockSpec(arr.shape, lambda b, _d=arr.ndim: (0,) * _d)

        out = pl.pallas_call(
            functools.partial(_fused_kernel, tn=tn, n_full=n_full, rem=rem),
            out_shape=jax.ShapeDtypeStruct((B, C, N), out_dtype),
            grid_spec=pltpu.PrefetchScalarGridSpec(
                num_scalar_prefetch=0,
                grid=(B,),
                in_specs=[pl.BlockSpec((1, C, N), lambda b: (b, 0, 0))]
                         + [wspec(a) for a in all_w],
                out_specs=pl.BlockSpec((1, C, N), lambda b: (b, 0, 0)),
                scratch_shapes=[pltpu.VMEM((C, C), jnp.float32)]),
            compiler_params=pltpu.CompilerParams(
                dimension_semantics=("parallel",),
                vmem_limit_bytes=int(min(budget, max(32 << 20, need_fused)))),
        )(x, *all_w)
    else:
        # ---- two-phase streamed fallback for very large per-batch slabs ----
        tn = _divisor_tile(N)
        if tn is None:
            # TODO(synk): pad + in-kernel pixel mask for awkward N in this path.
            raise NotImplementedError(
                "no lane-dense divisor tile for N=%d and the fused path does "
                "not fit the VMEM budget" % N)
        n_tiles = N // tn
        vmem_2p = int(min(budget, 32 << 20))

        def wspec2(arr):
            return pl.BlockSpec(arr.shape, lambda b, n, _d=arr.ndim: (0,) * _d)

        aq, bq2 = pl.pallas_call(
            _kv_stats_kernel,
            out_shape=(jax.ShapeDtypeStruct((B, C, C), jnp.bfloat16),
                       jax.ShapeDtypeStruct((B, C, 1), jnp.float32)),
            grid_spec=pltpu.PrefetchScalarGridSpec(
                num_scalar_prefetch=0,
                grid=(B, n_tiles),
                in_specs=[pl.BlockSpec((1, C, tn), lambda b, n: (b, 0, n))]
                         + [wspec2(a) for a in weights_p1],
                out_specs=[pl.BlockSpec((1, C, C), lambda b, n: (b, 0, 0)),
                           pl.BlockSpec((1, C, 1), lambda b, n: (b, 0, 0))],
                scratch_shapes=[pltpu.VMEM((C, C), jnp.float32)]),
            compiler_params=pltpu.CompilerParams(
                # TODO(synk): v7x megacore split of the reduction axis
                # (grid=(B, 2, n_tiles//2) with per-core partial A, summed in
                # phase 2) - not needed on single-TC v5e/v6e.
                dimension_semantics=("parallel", "arbitrary"),
                vmem_limit_bytes=vmem_2p),
        )(x, *weights_p1)

        out = pl.pallas_call(
            _attn_mlp_kernel,
            out_shape=jax.ShapeDtypeStruct((B, C, N), out_dtype),
            grid_spec=pltpu.PrefetchScalarGridSpec(
                num_scalar_prefetch=0,
                grid=(B, n_tiles),
                in_specs=[pl.BlockSpec((1, C, tn), lambda b, n: (b, 0, n)),
                          pl.BlockSpec((1, C, C), lambda b, n: (b, 0, 0)),
                          pl.BlockSpec((1, C, 1), lambda b, n: (b, 0, 0))]
                         + [wspec2(a) for a in weights_p2],
                out_specs=pl.BlockSpec((1, C, tn), lambda b, n: (b, 0, n))),
            compiler_params=pltpu.CompilerParams(
                dimension_semantics=("parallel", "parallel"),
                vmem_limit_bytes=vmem_2p),
        )(x, aq, bq2, *weights_p2)

    return out.reshape(B, C, H, W)  # pure reshape back to NCHW (no transpose)


# ---------------------------------------------------------------------------
# Pure-JAX reference (faithful to the PyTorch forward, full precision)
# ---------------------------------------------------------------------------
def simple_attn_reference(x, params, heads):
    B, C, H, W = x.shape
    headc = C // heads
    P = jax.lax.Precision.HIGHEST

    def conv1x1(t, w, b):
        return jnp.einsum("bchw,oc->bohw", t, w, precision=P) + b[None, :, None, None]

    def ln(t, w, b, eps=EPS):
        mean = t.mean(-1, keepdims=True)
        std = jnp.sqrt(jnp.sum((t - mean) ** 2, axis=-1, keepdims=True)
                       / (t.shape[-1] - 1))
        return w * ((t - mean) / (std + eps)) + b

    bias0 = x
    qkv = conv1x1(x, params["w_qkv"], params["b_qkv"])
    qkv = jnp.transpose(qkv, (0, 2, 3, 1)).reshape(B, H * W, heads, 3 * headc)
    qkv = jnp.transpose(qkv, (0, 2, 1, 3))
    q, k, v = jnp.split(qkv, 3, axis=-1)
    k = ln(k, params["kln_w"], params["kln_b"])
    v = ln(v, params["vln_w"], params["vln_b"])
    a = jnp.einsum("bhnd,bhne->bhde", k, v, precision=P) / (H * W)
    v2 = jnp.einsum("bhnd,bhde->bhne", q, a, precision=P)
    v2 = jnp.transpose(jnp.transpose(v2, (0, 2, 1, 3)).reshape(B, H, W, C),
                       (0, 3, 1, 2))
    ret = v2 + bias0
    h1 = jax.nn.gelu(conv1x1(ret, params["w_o1"], params["b_o1"]),
                     approximate=False)
    return conv1x1(h1, params["w_o2"], params["b_o2"]) + bias0


# ---------------------------------------------------------------------------
# Main
# ---------------------------------------------------------------------------
if __name__ == "__main__":
    B, C, H, W = 2, 32, 16, 16   # midc = 32, N = 256
    heads = 4
    headc = C // heads

    key = jax.random.PRNGKey(0)
    ks = jax.random.split(key, 11)

    params = {
        # 1x1 convs stored as (C_out, C_in) matrices (kernel size 1 dropped)
        "w_qkv": jax.random.normal(ks[0], (3 * C, C), jnp.float32) * 0.1,
        "b_qkv": jax.random.normal(ks[1], (3 * C,), jnp.float32) * 0.1,
        "w_o1":  jax.random.normal(ks[2], (C, C), jnp.float32) * 0.1,
        "b_o1":  jax.random.normal(ks[3], (C,), jnp.float32) * 0.1,
        "w_o2":  jax.random.normal(ks[4], (C, C), jnp.float32) * 0.1,
        "b_o2":  jax.random.normal(ks[5], (C,), jnp.float32) * 0.1,
        # LayerNorm params, shape (heads, 1, headc) as in the module
        "kln_w": 1.0 + 0.1 * jax.random.normal(ks[6], (heads, 1, headc), jnp.float32),
        "kln_b": 0.1 * jax.random.normal(ks[7], (heads, 1, headc), jnp.float32),
        "vln_w": 1.0 + 0.1 * jax.random.normal(ks[8], (heads, 1, headc), jnp.float32),
        "vln_b": 0.1 * jax.random.normal(ks[9], (heads, 1, headc), jnp.float32),
    }

    x = jax.random.normal(ks[10], (B, C, H, W), jnp.float32)

    ref = jax.block_until_ready(simple_attn_reference(x, params, heads))
    ref_np = np.asarray(ref)

    # fused single-pass path (per-batch pixel slab resident in VMEM)
    out_fused = jax.block_until_ready(simple_attn_forward(x, params, heads))
    np.testing.assert_allclose(np.asarray(jnp.asarray(out_fused, jnp.float32)),
                               ref_np, rtol=1e-2, atol=1e-2)

    # two-phase streamed fallback path (used when the slab exceeds VMEM budget)
    out_2p = jax.block_until_ready(
        simple_attn_forward(x, params, heads, force_two_phase=True))
    np.testing.assert_allclose(np.asarray(jnp.asarray(out_2p, jnp.float32)),
                               ref_np, rtol=1e-2, atol=1e-2)

    print("KERNEL_OK")
</pallas_src>

<mosaic_0001>
module attributes {stable_mosaic.version = 11 : i64} {
  func.func @_fused_kernel(%arg0: i32, %arg1: memref<1x32x256xf32, #tpu.memory_space<vmem>>, %arg2: memref<64x32xbf16, #tpu.memory_space<vmem>>, %arg3: memref<64x1xf32, #tpu.memory_space<vmem>>, %arg4: memref<64x1xf32, #tpu.memory_space<vmem>>, %arg5: memref<64x1xf32, #tpu.memory_space<vmem>>, %arg6: memref<64x64xbf16, #tpu.memory_space<vmem>>, %arg7: memref<64x64xbf16, #tpu.memory_space<vmem>>, %arg8: memref<32x32xf32, #tpu.memory_space<vmem>>, %arg9: memref<32x32xbf16, #tpu.memory_space<vmem>>, %arg10: memref<32x1xf32, #tpu.memory_space<vmem>>, %arg11: memref<32x32xbf16, #tpu.memory_space<vmem>>, %arg12: memref<32x1xf32, #tpu.memory_space<vmem>>, %arg13: memref<32x32xbf16, #tpu.memory_space<vmem>>, %arg14: memref<32x1xf32, #tpu.memory_space<vmem>>, %arg15: memref<1x32x256xbf16, #tpu.memory_space<vmem>>, %arg16: memref<32x32xf32, #tpu.memory_space<vmem>>) attributes {dimension_semantics = [#tpu.dimension_semantics<parallel>], iteration_bounds = array<i64: 2>, scalar_prefetch = 0 : i64, scratch_operands = 1 : i64, tpu.core_type = #tpu.core_type<tc>, window_params = [{transform_indices = @transform_0, window_bounds = array<i64: 1, 32, 256>}, {pipeline_mode = #tpu.pipeline_mode<synchronous>, transform_indices = @transform_1, window_bounds = array<i64: 64, 32>}, {pipeline_mode = #tpu.pipeline_mode<synchronous>, transform_indices = @transform_2, window_bounds = array<i64: 64, 1>}, {pipeline_mode = #tpu.pipeline_mode<synchronous>, transform_indices = @transform_3, window_bounds = array<i64: 64, 1>}, {pipeline_mode = #tpu.pipeline_mode<synchronous>, transform_indices = @transform_4, window_bounds = array<i64: 64, 1>}, {pipeline_mode = #tpu.pipeline_mode<synchronous>, transform_indices = @transform_5, window_bounds = array<i64: 64, 64>}, {pipeline_mode = #tpu.pipeline_mode<synchronous>, transform_indices = @transform_6, window_bounds = array<i64: 64, 64>}, {pipeline_mode = #tpu.pipeline_mode<synchronous>, transform_indices = @transform_7, window_bounds = array<i64: 32, 32>}, {pipeline_mode = #tpu.pipeline_mode<synchronous>, transform_indices = @transform_8, window_bounds = array<i64: 32, 32>}, {pipeline_mode = #tpu.pipeline_mode<synchronous>, transform_indices = @transform_9, window_bounds = array<i64: 32, 1>}, {pipeline_mode = #tpu.pipeline_mode<synchronous>, transform_indices = @transform_10, window_bounds = array<i64: 32, 32>}, {pipeline_mode = #tpu.pipeline_mode<synchronous>, transform_indices = @transform_11, window_bounds = array<i64: 32, 1>}, {pipeline_mode = #tpu.pipeline_mode<synchronous>, transform_indices = @transform_12, window_bounds = array<i64: 32, 32>}, {pipeline_mode = #tpu.pipeline_mode<synchronous>, transform_indices = @transform_13, window_bounds = array<i64: 32, 1>}, {transform_indices = @transform_14, window_bounds = array<i64: 1, 32, 256>}]} {
    %cst = arith.constant 0.000000e+00 : f32
    %0 = vector.broadcast %cst : f32 to vector<32x32xf32>
    %c0 = arith.constant 0 : index
    %c0_0 = arith.constant 0 : index
    %1 = vector.load %arg16[%c0, %c0_0] : memref<32x32xf32, #tpu.memory_space<vmem>>, vector<32x32xf32>
    tpu.vector_store %arg16[%c0, %c0_0], %0 {strides = array<i32>} : memref<32x32xf32, #tpu.memory_space<vmem>>, vector<32x32xf32>,
    %c0_i32 = arith.constant 0 : i32
    %c256_i32 = arith.constant 256 : i32
    %2 = arith.muli %c0_i32, %c256_i32 : i32
    %3 = tpu.assume_multiple %2, 128 : i32
    %c0_1 = arith.constant 0 : index
    %c0_2 = arith.constant 0 : index
    %4 = arith.index_cast %3 : i32 to index
    %5 = vector.load %arg1[%c0_1, %c0_2, %4] : memref<1x32x256xf32, #tpu.memory_space<vmem>>, vector<1x32x256xf32>
    %6 = vector.shape_cast %5 : vector<1x32x256xf32> to vector<32x256xf32>
    %c0_3 = arith.constant 0 : index
    %c0_4 = arith.constant 0 : index
    %7 = vector.load %arg16[%c0_3, %c0_4] : memref<32x32xf32, #tpu.memory_space<vmem>>, vector<32x32xf32>
    %c0_5 = arith.constant 0 : index
    %c0_6 = arith.constant 0 : index
    %8 = vector.load %arg2[%c0_5, %c0_6] : memref<64x32xbf16, #tpu.memory_space<vmem>>, vector<64x32xbf16>
    %c0_7 = arith.constant 0 : index
    %c0_8 = arith.constant 0 : index
    %9 = vector.load %arg3[%c0_7, %c0_8] : memref<64x1xf32, #tpu.memory_space<vmem>>, vector<64x1xf32>
    %c0_9 = arith.constant 0 : index
    %c0_10 = arith.constant 0 : index
    %10 = vector.load %arg4[%c0_9, %c0_10] : memref<64x1xf32, #tpu.memory_space<vmem>>, vector<64x1xf32>
    %c0_11 = arith.constant 0 : index
    %c0_12 = arith.constant 0 : index
    %11 = vector.load %arg5[%c0_11, %c0_12] : memref<64x1xf32, #tpu.memory_space<vmem>>, vector<64x1xf32>
    %c0_13 = arith.constant 0 : index
    %c0_14 = arith.constant 0 : index
    %12 = vector.load %arg6[%c0_13, %c0_14] : memref<64x64xbf16, #tpu.memory_space<vmem>>, vector<64x64xbf16>
    %c0_15 = arith.constant 0 : index
    %c0_16 = arith.constant 0 : index
    %13 = vector.load %arg7[%c0_15, %c0_16] : memref<64x64xbf16, #tpu.memory_space<vmem>>, vector<64x64xbf16>
    %14 = arith.truncf %6 : vector<32x256xf32> to vector<32x256xbf16>
    %cst_17 = arith.constant dense<0.000000e+00> : vector<64x256xf32>
    %15 = tpu.matmul %8, %14, %cst_17 {dimension_numbers = #tpu.dot_dimension_numbers<[1], [0], [0], [1], [0, 0, 1, 1], [], []>} : vector<64x32xbf16>, vector<32x256xbf16>, vector<64x256xf32> -> vector<64x256xf32>
    %16 = vector.broadcast %9 : vector<64x1xf32> to vector<64x256xf32>
    %17 = arith.addf %15, %16 : vector<64x256xf32>
    %18 = arith.truncf %17 : vector<64x256xf32> to vector<64x256xbf16>
    %cst_18 = arith.constant dense<0.000000e+00> : vector<64x256xf32>
    %19 = tpu.matmul %12, %18, %cst_18 {dimension_numbers = #tpu.dot_dimension_numbers<[1], [0], [0], [1], [0, 0, 1, 1], [], []>} : vector<64x64xbf16>, vector<64x256xbf16>, vector<64x256xf32> -> vector<64x256xf32>
    %20 = arith.subf %17, %19 : vector<64x256xf32>
    %21 = arith.mulf %20, %20 : vector<64x256xf32>
    %22 = arith.truncf %21 : vector<64x256xf32> to vector<64x256xbf16>
    %cst_19 = arith.constant dense<0.000000e+00> : vector<64x256xf32>
    %23 = tpu.matmul %13, %22, %cst_19 {dimension_numbers = #tpu.dot_dimension_numbers<[1], [0], [0], [1], [0, 0, 1, 1], [], []>} : vector<64x64xbf16>, vector<64x256xbf16>, vector<64x256xf32> -> vector<64x256xf32>
    %24 = math.sqrt %23 : vector<64x256xf32>
    %cst_20 = arith.constant 9.99999974E-6 : f32
    %25 = vector.broadcast %cst_20 : f32 to vector<64x256xf32>
    %26 = arith.addf %24, %25 : vector<64x256xf32>
    %27 = tpu.reciprocal %26 {approx = true} : vector<64x256xf32> -> vector<64x256xf32>
    %28 = arith.mulf %20, %27 : vector<64x256xf32>
    %29 = vector.broadcast %10 : vector<64x1xf32> to vector<64x256xf32>
    %30 = arith.mulf %29, %28 : vector<64x256xf32>
    %31 = vector.broadcast %11 : vector<64x1xf32> to vector<64x256xf32>
    %32 = arith.addf %30, %31 : vector<64x256xf32>
    %33 = vector.extract_strided_slice %32 {offsets = [0, 0], sizes = [32, 256], strides = [1, 1]} : vector<64x256xf32> to vector<32x256xf32>
    %34 = arith.truncf %33 : vector<32x256xf32> to vector<32x256xbf16>
    %35 = vector.extract_strided_slice %32 {offsets = [32, 0], sizes = [32, 256], strides = [1, 1]} : vector<64x256xf32> to vector<32x256xf32>
    %36 = arith.truncf %35 : vector<32x256xf32> to vector<32x256xbf16>
    %cst_21 = arith.constant dense<0.000000e+00> : vector<32x32xf32>
    %37 = tpu.matmul %34, %36, %cst_21 {dimension_numbers = #tpu.dot_dimension_numbers<[1], [1], [0], [0], [0, 0, 1, 0], [], []>} : vector<32x256xbf16>, vector<32x256xbf16>, vector<32x32xf32> -> vector<32x32xf32>
    %38 = arith.addf %7, %37 : vector<32x32xf32>
    %c0_22 = arith.constant 0 : index
    %c0_23 = arith.constant 0 : index
    %39 = vector.load %arg16[%c0_22, %c0_23] : memref<32x32xf32, #tpu.memory_space<vmem>>, vector<32x32xf32>
    tpu.vector_store %arg16[%c0_22, %c0_23], %38 {strides = array<i32>} : memref<32x32xf32, #tpu.memory_space<vmem>>, vector<32x32xf32>,
    %c1_i32 = arith.constant 1 : i32
    %c0_24 = arith.constant 0 : index
    %c0_25 = arith.constant 0 : index
    %40 = vector.load %arg16[%c0_24, %c0_25] : memref<32x32xf32, #tpu.memory_space<vmem>>, vector<32x32xf32>
    %c0_26 = arith.constant 0 : index
    %c0_27 = arith.constant 0 : index
    %41 = vector.load %arg8[%c0_26, %c0_27] : memref<32x32xf32, #tpu.memory_space<vmem>>, vector<32x32xf32>
    %c0_28 = arith.constant 0 : index
    %c0_29 = arith.constant 0 : index
    %42 = vector.load %arg9[%c0_28, %c0_29] : memref<32x32xbf16, #tpu.memory_space<vmem>>, vector<32x32xbf16>
    %c0_30 = arith.constant 0 : index
    %c0_31 = arith.constant 0 : index
    %43 = vector.load %arg10[%c0_30, %c0_31] : memref<32x1xf32, #tpu.memory_space<vmem>>, vector<32x1xf32>
    %44 = arith.mulf %40, %41 : vector<32x32xf32>
    %45 = arith.truncf %44 : vector<32x32xf32> to vector<32x32xbf16>
    %cst_32 = arith.constant dense<0.000000e+00> : vector<32x32xf32>
    %46 = tpu.matmul %45, %42, %cst_32 {dimension_numbers = #tpu.dot_dimension_numbers<[0], [0], [1], [1], [0, 1, 1, 1], [], []>} : vector<32x32xbf16>, vector<32x32xbf16>, vector<32x32xf32> -> vector<32x32xf32>
    %47 = arith.truncf %43 : vector<32x1xf32> to vector<32x1xbf16>
    %cst_33 = arith.constant dense<0.000000e+00> : vector<32x1xf32>
    %48 = tpu.matmul %45, %47, %cst_33 {dimension_numbers = #tpu.dot_dimension_numbers<[0], [0], [1], [1], [0, 1, 1, 1], [], []>} : vector<32x32xbf16>, vector<32x1xbf16>, vector<32x1xf32> -> vector<32x1xf32>
    %49 = arith.truncf %46 : vector<32x32xf32> to vector<32x32xbf16>
    %c0_i32_34 = arith.constant 0 : i32
    %c256_i32_35 = arith.constant 256 : i32
    %50 = arith.muli %c0_i32_34, %c256_i32_35 : i32
    %51 = tpu.assume_multiple %50, 128 : i32
    %c0_36 = arith.constant 0 : index
    %c0_37 = arith.constant 0 : index
    %52 = arith.index_cast %51 : i32 to index
    %53 = vector.load %arg1[%c0_36, %c0_37, %52] : memref<1x32x256xf32, #tpu.memory_space<vmem>>, vector<1x32x256xf32>
    %54 = vector.shape_cast %53 : vector<1x32x256xf32> to vector<32x256xf32>
    %c0_38 = arith.constant 0 : index
    %c0_39 = arith.constant 0 : index
    %55 = vector.load %arg11[%c0_38, %c0_39] : memref<32x32xbf16, #tpu.memory_space<vmem>>, vector<32x32xbf16>
    %c0_40 = arith.constant 0 : index
    %c0_41 = arith.constant 0 : index
    %56 = vector.load %arg12[%c0_40, %c0_41] : memref<32x1xf32, #tpu.memory_space<vmem>>, vector<32x1xf32>
    %c0_42 = arith.constant 0 : index
    %c0_43 = arith.constant 0 : index
    %57 = vector.load %arg13[%c0_42, %c0_43] : memref<32x32xbf16, #tpu.memory_space<vmem>>, vector<32x32xbf16>
    %c0_44 = arith.constant 0 : index
    %c0_45 = arith.constant 0 : index
    %58 = vector.load %arg14[%c0_44, %c0_45] : memref<32x1xf32, #tpu.memory_space<vmem>>, vector<32x1xf32>
    %59 = arith.truncf %54 : vector<32x256xf32> to vector<32x256xbf16>
    %cst_46 = arith.constant dense<0.000000e+00> : vector<32x256xf32>
    %60 = tpu.matmul %49, %59, %cst_46 {dimension_numbers = #tpu.dot_dimension_numbers<[1], [0], [0], [1], [0, 0, 1, 1], [], []>} : vector<32x32xbf16>, vector<32x256xbf16>, vector<32x256xf32> -> vector<32x256xf32>
    %61 = vector.broadcast %48 : vector<32x1xf32> to vector<32x256xf32>
    %62 = arith.addf %60, %61 : vector<32x256xf32>
    %63 = arith.addf %62, %54 : vector<32x256xf32>
    %64 = arith.truncf %63 : vector<32x256xf32> to vector<32x256xbf16>
    %cst_47 = arith.constant dense<0.000000e+00> : vector<32x256xf32>
    %65 = tpu.matmul %55, %64, %cst_47 {dimension_numbers = #tpu.dot_dimension_numbers<[1], [0], [0], [1], [0, 0, 1, 1], [], []>} : vector<32x32xbf16>, vector<32x256xbf16>, vector<32x256xf32> -> vector<32x256xf32>
    %66 = vector.broadcast %56 : vector<32x1xf32> to vector<32x256xf32>
    %67 = arith.addf %65, %66 : vector<32x256xf32>
    %cst_48 = arith.constant 5.000000e-01 : f32
    %68 = vector.broadcast %cst_48 : f32 to vector<32x256xf32>
    %69 = arith.mulf %68, %67 : vector<32x256xf32>
    %70 = arith.mulf %67, %67 : vector<32x256xf32>
    %71 = arith.mulf %70, %67 : vector<32x256xf32>
    %cst_49 = arith.constant 4.471500e-02 : f32
    %72 = vector.broadcast %cst_49 : f32 to vector<32x256xf32>
    %73 = arith.mulf %72, %71 : vector<32x256xf32>
    %74 = arith.addf %67, %73 : vector<32x256xf32>
    %cst_50 = arith.constant 0.797884583 : f32
    %75 = vector.broadcast %cst_50 : f32 to vector<32x256xf32>
    %76 = arith.mulf %75, %74 : vector<32x256xf32>
    %77 = math.tanh %76 : vector<32x256xf32>
    %cst_51 = arith.constant 1.000000e+00 : f32
    %78 = vector.broadcast %cst_51 : f32 to vector<32x256xf32>
    %79 = arith.addf %78, %77 : vector<32x256xf32>
    %80 = arith.mulf %69, %79 : vector<32x256xf32>
    %81 = arith.truncf %80 : vector<32x256xf32> to vector<32x256xbf16>
    %cst_52 = arith.constant dense<0.000000e+00> : vector<32x256xf32>
    %82 = tpu.matmul %57, %81, %cst_52 {dimension_numbers = #tpu.dot_dimension_numbers<[1], [0], [0], [1], [0, 0, 1, 1], [], []>} : vector<32x32xbf16>, vector<32x256xbf16>, vector<32x256xf32> -> vector<32x256xf32>
    %83 = vector.broadcast %58 : vector<32x1xf32> to vector<32x256xf32>
    %84 = arith.addf %82, %83 : vector<32x256xf32>
    %85 = arith.addf %84, %54 : vector<32x256xf32>
    %86 = arith.truncf %85 : vector<32x256xf32> to vector<32x256xbf16>
    %c0_53 = arith.constant 0 : index
    %c0_54 = arith.constant 0 : index
    %87 = arith.index_cast %51 : i32 to index
    %88 = vector.load %arg15[%c0_53, %c0_54, %87] : memref<1x32x256xbf16, #tpu.memory_space<vmem>>, vector<1x32x256xbf16>
    %89 = vector.shape_cast %88 : vector<1x32x256xbf16> to vector<32x256xbf16>
    %90 = vector.shape_cast %86 : vector<32x256xbf16> to vector<1x32x256xbf16>
    tpu.vector_store %arg15[%c0_53, %c0_54, %87], %90 {strides = array<i32>} : memref<1x32x256xbf16, #tpu.memory_space<vmem>>, vector<1x32x256xbf16>,
    %c1_i32_55 = arith.constant 1 : i32
    return
  }
  func.func @transform_0(%arg0: i32) -> (i32, i32, i32) {
    %c0_i32 = arith.constant 0 : i32
    %c0_i32_0 = arith.constant 0 : i32
    %c0_i32_1 = arith.constant 0 : i32
    return %arg0, %c0_i32, %c0_i32_0 : i32, i32, i32
  }
  func.func @transform_1(%arg0: i32) -> (i32, i32) {
    %c0_i32 = arith.constant 0 : i32
    %c0_i32_0 = arith.constant 0 : i32
    %c0_i32_1 = arith.constant 0 : i32
    return %c0_i32, %c0_i32_0 : i32, i32
  }
  func.func @transform_2(%arg0: i32) -> (i32, i32) {
    %c0_i32 = arith.constant 0 : i32
    %c0_i32_0 = arith.constant 0 : i32
    %c0_i32_1 = arith.constant 0 : i32
    return %c0_i32, %c0_i32_0 : i32, i32
  }
  func.func @transform_3(%arg0: i32) -> (i32, i32) {
    %c0_i32 = arith.constant 0 : i32
    %c0_i32_0 = arith.constant 0 : i32
    %c0_i32_1 = arith.constant 0 : i32
    return %c0_i32, %c0_i32_0 : i32, i32
  }
  func.func @transform_4(%arg0: i32) -> (i32, i32) {
    %c0_i32 = arith.constant 0 : i32
    %c0_i32_0 = arith.constant 0 : i32
    %c0_i32_1 = arith.constant 0 : i32
    return %c0_i32, %c0_i32_0 : i32, i32
  }
  func.func @transform_5(%arg0: i32) -> (i32, i32) {
    %c0_i32 = arith.constant 0 : i32
    %c0_i32_0 = arith.constant 0 : i32
    %c0_i32_1 = arith.constant 0 : i32
    return %c0_i32, %c0_i32_0 : i32, i32
  }
  func.func @transform_6(%arg0: i32) -> (i32, i32) {
    %c0_i32 = arith.constant 0 : i32
    %c0_i32_0 = arith.constant 0 : i32
    %c0_i32_1 = arith.constant 0 : i32
    return %c0_i32, %c0_i32_0 : i32, i32
  }
  func.func @transform_7(%arg0: i32) -> (i32, i32) {
    %c0_i32 = arith.constant 0 : i32
    %c0_i32_0 = arith.constant 0 : i32
    %c0_i32_1 = arith.constant 0 : i32
    return %c0_i32, %c0_i32_0 : i32, i32
  }
  func.func @transform_8(%arg0: i32) -> (i32, i32) {
    %c0_i32 = arith.constant 0 : i32
    %c0_i32_0 = arith.constant 0 : i32
    %c0_i32_1 = arith.constant 0 : i32
    return %c0_i32, %c0_i32_0 : i32, i32
  }
  func.func @transform_9(%arg0: i32) -> (i32, i32) {
    %c0_i32 = arith.constant 0 : i32
    %c0_i32_0 = arith.constant 0 : i32
    %c0_i32_1 = arith.constant 0 : i32
    return %c0_i32, %c0_i32_0 : i32, i32
  }
  func.func @transform_10(%arg0: i32) -> (i32, i32) {
    %c0_i32 = arith.constant 0 : i32
    %c0_i32_0 = arith.constant 0 : i32
    %c0_i32_1 = arith.constant 0 : i32
    return %c0_i32, %c0_i32_0 : i32, i32
  }
  func.func @transform_11(%arg0: i32) -> (i32, i32) {
    %c0_i32 = arith.constant 0 : i32
    %c0_i32_0 = arith.constant 0 : i32
    %c0_i32_1 = arith.constant 0 : i32
    return %c0_i32, %c0_i32_0 : i32, i32
  }
  func.func @transform_12(%arg0: i32) -> (i32, i32) {
    %c0_i32 = arith.constant 0 : i32
    %c0_i32_0 = arith.constant 0 : i32
    %c0_i32_1 = arith.constant 0 : i32
    return %c0_i32, %c0_i32_0 : i32, i32
  }
  func.func @transform_13(%arg0: i32) -> (i32, i32) {
    %c0_i32 = arith.constant 0 : i32
    %c0_i32_0 = arith.constant 0 : i32
    %c0_i32_1 = arith.constant 0 : i32
    return %c0_i32, %c0_i32_0 : i32, i32
  }
  func.func @transform_14(%arg0: i32) -> (i32, i32, i32) {
    %c0_i32 = arith.constant 0 : i32
    %c0_i32_0 = arith.constant 0 : i32
    %c0_i32_1 = arith.constant 0 : i32
    return %arg0, %c0_i32, %c0_i32_0 : i32, i32, i32
  }
}

</mosaic_0001>

<llo_original>
// kernel: tpu_custom_call.1
$region0: #{tpu_custom_call.1}
  #allocation0 [shape = 'u32[]', space=smem, size = 0x4, offset = 0x4, fixed_abs, tag = 'smem constant byte address 0x4 - core index']
  #allocation1 [shape = 'u32[144,128]{1,0:T(1,128)}', space=vmem, size = 0x12000, scoped, tag = 'internal scratch']
  #allocation2 [shape = 'f32[32,32]{1,0:T(8,128)}', space=vmem, size = 0x4000, scoped, tag = 'scratch operand']
  %s0 = inlined_call_operand.vmem [shape: f32[2,32,256], index: 0, kind: input, shape index: {}]
  %s1 = inlined_call_operand.vmem [shape: bf16[64,32], index: 1, kind: input, shape index: {}]
  %s2 = inlined_call_operand.vmem [shape: f32[64,1], index: 2, kind: input, shape index: {}]
  %s3 = inlined_call_operand.vmem [shape: f32[64,1], index: 3, kind: input, shape index: {}]
  %s4 = inlined_call_operand.vmem [shape: f32[64,1], index: 4, kind: input, shape index: {}]
  %s5 = inlined_call_operand.vmem [shape: bf16[64,64], index: 5, kind: input, shape index: {}]
  %s6 = inlined_call_operand.vmem [shape: bf16[64,64], index: 6, kind: input, shape index: {}]
  %s7 = inlined_call_operand.vmem [shape: f32[32,32], index: 7, kind: input, shape index: {}]
  %s8 = inlined_call_operand.vmem [shape: bf16[32,32], index: 8, kind: input, shape index: {}]
  %s9 = inlined_call_operand.vmem [shape: f32[32,1], index: 9, kind: input, shape index: {}]
  %s10 = inlined_call_operand.vmem [shape: bf16[32,32], index: 10, kind: input, shape index: {}]
  %s11 = inlined_call_operand.vmem [shape: f32[32,1], index: 11, kind: input, shape index: {}]
  %s12 = inlined_call_operand.vmem [shape: bf16[32,32], index: 12, kind: input, shape index: {}]
  %s13 = inlined_call_operand.vmem [shape: f32[32,1], index: 13, kind: input, shape index: {}]
  %s14 = inlined_call_operand.hbm [shape: bf16[2,32,256], index: 14, kind: output, shape index: {}]
  %s15 = sld [smem:[#allocation0]]
  $region89: #{tpu_custom_call.1} parent=0
    _
  %s17 = ssub.s32 1, %s15
  %s18 = scalar_select 0, %s17, %s15
  $region1: #{tpu_custom_call.1} parent=0
    #allocation3 [shape = 'u8[32768]{0}', space=vmem, size = 0x8000, scoped, tag = 'output window, operand 0']
    #allocation4 [shape = 's32[2]{0}', space=sflag, size = 0x8, scoped, tag = 'scoped memory for tpu_custom_call.1']
    %19 = vsyncpa [#allocation4], 0
    %s20 = scalar_lea.sflag [#allocation4], 1
    %21 = vsyncpa %s20, 0
    loop: start=0, step=1, limit=4
    $region2: #{tpu_custom_call.1} parent=1 // loop_pre_header
      _
    $region3: #{tpu_custom_call.1} parent=1 // loop_header
      %s23 = sphi 0, %s27
      %p24 = scmp.ge.s32.totalorder %s23, 4
      %s33 = sphi 0, %s35
      %s36 = sphi 0, %s33
      %s37 = sphi 0, %s36
      %s53 = sphi 0, %s37
      %s57 = sphi 0, %s57
      %s59 = sphi 0, %s57
      %s60 = sphi 0, %s59
      %s74 = sphi 0, %s60
      %s78 = sphi 0, %s78
      %s80 = sphi 0, %s78
      %s81 = sphi 0, %s80
      %s95 = sphi 0, %s81
      %s99 = sphi 0, %s99
      %s101 = sphi 0, %s99
      %s102 = sphi 0, %s101
      %s116 = sphi 0, %s102
      %s120 = sphi 0, %s120
      %s122 = sphi 0, %s120
      %s123 = sphi 0, %s122
      %s137 = sphi 0, %s123
      %s141 = sphi 0, %s141
      %s143 = sphi 0, %s141
      %s144 = sphi 0, %s143
      %s158 = sphi 0, %s144
      %s162 = sphi 0, %s162
      %s164 = sphi 0, %s162
      %s165 = sphi 0, %s164
      %s179 = sphi 0, %s165
      %s183 = sphi 0, %s183
      %s185 = sphi 0, %s183
      %s186 = sphi 0, %s185
      %s200 = sphi 0, %s186
      %s204 = sphi 0, %s204
      %s206 = sphi 0, %s204
      %s207 = sphi 0, %s206
      %s221 = sphi 0, %s207
      %s225 = sphi 0, %s225
      %s227 = sphi 0, %s225
      %s228 = sphi 0, %s227
      %s242 = sphi 0, %s228
      %s246 = sphi 0, %s246
      %s248 = sphi 0, %s246
      %s249 = sphi 0, %s248
      %s263 = sphi 0, %s249
      %s267 = sphi 0, %s267
      %s269 = sphi 0, %s267
      %s270 = sphi 0, %s269
      %s284 = sphi 0, %s270
      %s288 = sphi 0, %s288
      %s290 = sphi 0, %s288
      %s291 = sphi 0, %s290
      %s305 = sphi 0, %s291
      %s309 = sphi 0, %s309
      %s311 = sphi 0, %s309
      %s312 = sphi 0, %s311
      %s326 = sphi 0, %s312
      %s332 = sphi 0, %s334
      %s335 = sphi 0, %s332
      %s336 = sphi 0, %s335
      %s352 = sphi 0, %s336
    $region4: #{tpu_custom_call.1} parent=1 // loop_header_branch
      %26 = sbr.rel (%p24) target = $region8
    $region5: #{tpu_custom_call.1} parent=1 // loop_body
      %s28 = ssub.s32 %s23, 1
      %s29 = ssub.s32 %s23, 2
      %s30 = sadd.s32 %s23, 1
      %s31 = ssub.s32 %s23, %s30
      %p32 = scmp.eq.s32.totalorder %s31, 0
      %s34 = sadd.s32 %s33, 1
      %s35 = scalar_select %p32, %s33, %s34
      %p38 = pneg %p32
      %p39 = scmp.eq.s32.totalorder %s23, 1
      %p40 = por %p38, %p39
      %p41 = scmp.ne.s32.totalorder %s33, %s36
      %p42 = scmp.eq.s32.totalorder %s23, 0
      %p43 = por %p41, %p42
      %p44 = scmp.ne.s32.totalorder %s33, %s36
      %p45 = scmp.eq.s32.totalorder %s28, 1
      %p46 = por %p44, %p45
      %p47 = scmp.ne.s32.totalorder %s36, %s37
      %p48 = scmp.eq.s32.totalorder %s28, 0
      %p49 = por %p47, %p48
      %p50 = scmp.ne.s32.totalorder %s36, %s37
      %p51 = scmp.eq.s32.totalorder %s29, 1
      %p52 = por %p50, %p51
      %p54 = scmp.ne.s32.totalorder %s37, %s53
      %p55 = scmp.eq.s32.totalorder %s29, 0
      %p56 = por %p54, %p55
      %s58 = sadd.s32 %s57, 1
      %p61 = scmp.eq.s32.totalorder %s23, 1
      %p62 = scmp.ne.s32.totalorder %s57, %s59
      %p63 = scmp.eq.s32.totalorder %s23, 0
      %p64 = por %p62, %p63
      %p65 = scmp.ne.s32.totalorder %s57, %s59
      %p66 = scmp.eq.s32.totalorder %s28, 1
      %p67 = por %p65, %p66
      %p68 = scmp.ne.s32.totalorder %s59, %s60
      %p69 = scmp.eq.s32.totalorder %s28, 0
      %p70 = por %p68, %p69
      %p71 = scmp.ne.s32.totalorder %s59, %s60
      %p72 = scmp.eq.s32.totalorder %s29, 1
      %p73 = por %p71, %p72
      %p75 = scmp.ne.s32.totalorder %s60, %s74
      %p76 = scmp.eq.s32.totalorder %s29, 0
      %p77 = por %p75, %p76
      %s79 = sadd.s32 %s78, 1
      %p82 = scmp.eq.s32.totalorder %s23, 1
      %p83 = scmp.ne.s32.totalorder %s78, %s80
      %p84 = scmp.eq.s32.totalorder %s23, 0
      %p85 = por %p83, %p84
      %p86 = scmp.ne.s32.totalorder %s78, %s80
      %p87 = scmp.eq.s32.totalorder %s28, 1
      %p88 = por %p86, %p87
      %p89 = scmp.ne.s32.totalorder %s80, %s81
      %p90 = scmp.eq.s32.totalorder %s28, 0
      %p91 = por %p89, %p90
      %p92 = scmp.ne.s32.totalorder %s80, %s81
      %p93 = scmp.eq.s32.totalorder %s29, 1
      %p94 = por %p92, %p93
      %p96 = scmp.ne.s32.totalorder %s81, %s95
      %p97 = scmp.eq.s32.totalorder %s29, 0
      %p98 = por %p96, %p97
      %s100 = sadd.s32 %s99, 1
      %p103 = scmp.eq.s32.totalorder %s23, 1
      %p104 = scmp.ne.s32.totalorder %s99, %s101
      %p105 = scmp.eq.s32.totalorder %s23, 0
      %p106 = por %p104, %p105
      %p107 = scmp.ne.s32.totalorder %s99, %s101
      %p108 = scmp.eq.s32.totalorder %s28, 1
      %p109 = por %p107, %p108
      %p110 = scmp.ne.s32.totalorder %s101, %s102
      %p111 = scmp.eq.s32.totalorder %s28, 0
      %p112 = por %p110, %p111
      %p113 = scmp.ne.s32.totalorder %s101, %s102
      %p114 = scmp.eq.s32.totalorder %s29, 1
      %p115 = por %p113, %p114
      %p117 = scmp.ne.s32.totalorder %s102, %s116
      %p118 = scmp.eq.s32.totalorder %s29, 0
      %p119 = por %p117, %p118
      %s121 = sadd.s32 %s120, 1
      %p124 = scmp.eq.s32.totalorder %s23, 1
      %p125 = scmp.ne.s32.totalorder %s120, %s122
      %p126 = scmp.eq.s32.totalorder %s23, 0
      %p127 = por %p125, %p126
      %p128 = scmp.ne.s32.totalorder %s120, %s122
      %p129 = scmp.eq.s32.totalorder %s28, 1
      %p130 = por %p128, %p129
      %p131 = scmp.ne.s32.totalorder %s122, %s123
      %p132 = scmp.eq.s32.totalorder %s28, 0
      %p133 = por %p131, %p132
      %p134 = scmp.ne.s32.totalorder %s122, %s123
      %p135 = scmp.eq.s32.totalorder %s29, 1
      %p136 = por %p134, %p135
      %p138 = scmp.ne.s32.totalorder %s123, %s137
      %p139 = scmp.eq.s32.totalorder %s29, 0
      %p140 = por %p138, %p139
      %s142 = sadd.s32 %s141, 1
      %p145 = scmp.eq.s32.totalorder %s23, 1
      %p146 = scmp.ne.s32.totalorder %s141, %s143
      %p147 = scmp.eq.s32.totalorder %s23, 0
      %p148 = por %p146, %p147
      %p149 = scmp.ne.s32.totalorder %s141, %s143
      %p150 = scmp.eq.s32.totalorder %s28, 1
      %p151 = por %p149, %p150
      %p152 = scmp.ne.s32.totalorder %s143, %s144
      %p153 = scmp.eq.s32.totalorder %s28, 0
      %p154 = por %p152, %p153
      %p155 = scmp.ne.s32.totalorder %s143, %s144
      %p156 = scmp.eq.s32.totalorder %s29, 1
      %p157 = por %p155, %p156
      %p159 = scmp.ne.s32.totalorder %s144, %s158
      %p160 = scmp.eq.s32.totalorder %s29, 0
      %p161 = por %p159, %p160
      %s163 = sadd.s32 %s162, 1
      %p166 = scmp.eq.s32.totalorder %s23, 1
      %p167 = scmp.ne.s32.totalorder %s162, %s164
      %p168 = scmp.eq.s32.totalorder %s23, 0
      %p169 = por %p167, %p168
      %p170 = scmp.ne.s32.totalorder %s162, %s164
      %p171 = scmp.eq.s32.totalorder %s28, 1
      %p172 = por %p170, %p171
      %p173 = scmp.ne.s32.totalorder %s164, %s165
      %p174 = scmp.eq.s32.totalorder %s28, 0
      %p175 = por %p173, %p174
      %p176 = scmp.ne.s32.totalorder %s164, %s165
      %p177 = scmp.eq.s32.totalorder %s29, 1
      %p178 = por %p176, %p177
      %p180 = scmp.ne.s32.totalorder %s165, %s179
      %p181 = scmp.eq.s32.totalorder %s29, 0
      %p182 = por %p180, %p181
      %s184 = sadd.s32 %s183, 1
      %p187 = scmp.eq.s32.totalorder %s23, 1
      %p188 = scmp.ne.s32.totalorder %s183, %s185
      %p189 = scmp.eq.s32.totalorder %s23, 0
      %p190 = por %p188, %p189
      %p191 = scmp.ne.s32.totalorder %s183, %s185
      %p192 = scmp.eq.s32.totalorder %s28, 1
      %p193 = por %p191, %p192
      %p194 = scmp.ne.s32.totalorder %s185, %s186
      %p195 = scmp.eq.s32.totalorder %s28, 0
      %p196 = por %p194, %p195
      %p197 = scmp.ne.s32.totalorder %s185, %s186
      %p198 = scmp.eq.s32.totalorder %s29, 1
      %p199 = por %p197, %p198
      %p201 = scmp.ne.s32.totalorder %s186, %s200
      %p202 = scmp.eq.s32.totalorder %s29, 0
      %p203 = por %p201, %p202
      %s205 = sadd.s32 %s204, 1
      %p208 = scmp.eq.s32.totalorder %s23, 1
      %p209 = scmp.ne.s32.totalorder %s204, %s206
      %p210 = scmp.eq.s32.totalorder %s23, 0
      %p211 = por %p209, %p210
      %p212 = scmp.ne.s32.totalorder %s204, %s206
      %p213 = scmp.eq.s32.totalorder %s28, 1
      %p214 = por %p212, %p213
      %p215 = scmp.ne.s32.totalorder %s206, %s207
      %p216 = scmp.eq.s32.totalorder %s28, 0
      %p217 = por %p215, %p216
      %p218 = scmp.ne.s32.totalorder %s206, %s207
      %p219 = scmp.eq.s32.totalorder %s29, 1
      %p220 = por %p218, %p219
      %p222 = scmp.ne.s32.totalorder %s207, %s221
      %p223 = scmp.eq.s32.totalorder %s29, 0
      %p224 = por %p222, %p223
      %s226 = sadd.s32 %s225, 1
      %p229 = scmp.eq.s32.totalorder %s23, 1
      %p230 = scmp.ne.s32.totalorder %s225, %s227
      %p231 = scmp.eq.s32.totalorder %s23, 0
      %p232 = por %p230, %p231
      %p233 = scmp.ne.s32.totalorder %s225, %s227
      %p234 = scmp.eq.s32.totalorder %s28, 1
      %p235 = por %p233, %p234
      %p236 = scmp.ne.s32.totalorder %s227, %s228
      %p237 = scmp.eq.s32.totalorder %s28, 0
      %p238 = por %p236, %p237
      %p239 = scmp.ne.s32.totalorder %s227, %s228
      %p240 = scmp.eq.s32.totalorder %s29, 1
      %p241 = por %p239, %p240
      %p243 = scmp.ne.s32.totalorder %s228, %s242
      %p244 = scmp.eq.s32.totalorder %s29, 0
      %p245 = por %p243, %p244
      %s247 = sadd.s32 %s246, 1
      %p250 = scmp.eq.s32.totalorder %s23, 1
      %p251 = scmp.ne.s32.totalorder %s246, %s248
      %p252 = scmp.eq.s32.totalorder %s23, 0
      %p253 = por %p251, %p252
      %p254 = scmp.ne.s32.totalorder %s246, %s248
      %p255 = scmp.eq.s32.totalorder %s28, 1
      %p256 = por %p254, %p255
      %p257 = scmp.ne.s32.totalorder %s248, %s249
      %p258 = scmp.eq.s32.totalorder %s28, 0
      %p259 = por %p257, %p258
      %p260 = scmp.ne.s32.totalorder %s248, %s249
      %p261 = scmp.eq.s32.totalorder %s29, 1
      %p262 = por %p260, %p261
      %p264 = scmp.ne.s32.totalorder %s249, %s263
      %p265 = scmp.eq.s32.totalorder %s29, 0
      %p266 = por %p264, %p265
      %s268 = sadd.s32 %s267, 1
      %p271 = scmp.eq.s32.totalorder %s23, 1
      %p272 = scmp.ne.s32.totalorder %s267, %s269
      %p273 = scmp.eq.s32.totalorder %s23, 0
      %p274 = por %p272, %p273
      %p275 = scmp.ne.s32.totalorder %s267, %s269
      %p276 = scmp.eq.s32.totalorder %s28, 1
      %p277 = por %p275, %p276
      %p278 = scmp.ne.s32.totalorder %s269, %s270
      %p279 = scmp.eq.s32.totalorder %s28, 0
      %p280 = por %p278, %p279
      %p281 = scmp.ne.s32.totalorder %s269, %s270
      %p282 = scmp.eq.s32.totalorder %s29, 1
      %p283 = por %p281, %p282
      %p285 = scmp.ne.s32.totalorder %s270, %s284
      %p286 = scmp.eq.s32.totalorder %s29, 0
      %p287 = por %p285, %p286
      %s289 = sadd.s32 %s288, 1
      %p292 = scmp.eq.s32.totalorder %s23, 1
      %p293 = scmp.ne.s32.totalorder %s288, %s290
      %p294 = scmp.eq.s32.totalorder %s23, 0
      %p295 = por %p293, %p294
      %p296 = scmp.ne.s32.totalorder %s288, %s290
      %p297 = scmp.eq.s32.totalorder %s28, 1
      %p298 = por %p296, %p297
      %p299 = scmp.ne.s32.totalorder %s290, %s291
      %p300 = scmp.eq.s32.totalorder %s28, 0
      %p301 = por %p299, %p300
      %p302 = scmp.ne.s32.totalorder %s290, %s291
      %p303 = scmp.eq.s32.totalorder %s29, 1
      %p304 = por %p302, %p303
      %p306 = scmp.ne.s32.totalorder %s291, %s305
      %p307 = scmp.eq.s32.totalorder %s29, 0
      %p308 = por %p306, %p307
      %s310 = sadd.s32 %s309, 1
      %p313 = scmp.eq.s32.totalorder %s23, 1
      %p314 = scmp.ne.s32.totalorder %s309, %s311
      %p315 = scmp.eq.s32.totalorder %s23, 0
      %p316 = por %p314, %p315
      %p317 = scmp.ne.s32.totalorder %s309, %s311
      %p318 = scmp.eq.s32.totalorder %s28, 1
      %p319 = por %p317, %p318
      %p320 = scmp.ne.s32.totalorder %s311, %s312
      %p321 = scmp.eq.s32.totalorder %s28, 0
      %p322 = por %p320, %p321
      %p323 = scmp.ne.s32.totalorder %s311, %s312
      %p324 = scmp.eq.s32.totalorder %s29, 1
      %p325 = por %p323, %p324
      %p327 = scmp.ne.s32.totalorder %s312, %s326
      %p328 = scmp.eq.s32.totalorder %s29, 0
      %p329 = por %p327, %p328
      %s330 = ssub.s32 %s23, %s30
      %p331 = scmp.eq.s32.totalorder %s330, 0
      %s333 = sadd.s32 %s332, 1
      %s334 = scalar_select %p331, %s332, %s333
      %p337 = pneg %p331
      %p338 = scmp.eq.s32.totalorder %s23, 1
      %p339 = por %p337, %p338
      %p340 = scmp.ne.s32.totalorder %s332, %s335
      %p341 = scmp.eq.s32.totalorder %s23, 0
      %p342 = por %p340, %p341
      %p343 = scmp.ne.s32.totalorder %s332, %s335
      %p344 = scmp.eq.s32.totalorder %s28, 1
      %p345 = por %p343, %p344
      %p346 = scmp.ne.s32.totalorder %s335, %s336
      %p347 = scmp.eq.s32.totalorder %s28, 0
      %p348 = por %p346, %p347
      %p349 = scmp.ne.s32.totalorder %s335, %s336
      %p350 = scmp.eq.s32.totalorder %s29, 1
      %p351 = por %p349, %p350
      %p353 = scmp.ne.s32.totalorder %s336, %s352
      %p354 = scmp.eq.s32.totalorder %s29, 0
      %p355 = por %p353, %p354
      %p356 = scmp.le.s32.totalorder 1, %s23
      %p357 = scmp.lt.s32.totalorder %s23, 3
      %p358 = pnand %p356, %p357
      %p359 = pneg %p358
      // Predicated region
      $region9: #{tpu_custom_call.1} parent=5 // pred_check
        _
      $region10: #{tpu_custom_call.1} parent=5 // pred_check_branch
        %361 = sbr.rel (%p358) target = $region12
      $region11: #{tpu_custom_call.1} parent=5 // pred_region
        %s362 = ssub.s32 %s23, 1
        // Predicated region
        $region13: #{tpu_custom_call.1} parent=11 // pred_check
          %p363 = pneg %p70
        $region14: #{tpu_custom_call.1} parent=11 // pred_check_branch
          %365 = sbr.rel (%p363) target = $region16
        $region15: #{tpu_custom_call.1} parent=11 // pred_region
          _
        $region16: #{tpu_custom_call.1} parent=11 // pred_fallthru
          _
        // Predicated region
        $region17: #{tpu_custom_call.1} parent=11 // pred_check
          %p366 = pneg %p91
        $region18: #{tpu_custom_call.1} parent=11 // pred_check_branch
          %368 = sbr.rel (%p366) target = $region20
        $region19: #{tpu_custom_call.1} parent=11 // pred_region
          _
        $region20: #{tpu_custom_call.1} parent=11 // pred_fallthru
          _
        // Predicated region
        $region21: #{tpu_custom_call.1} parent=11 // pred_check
          %p369 = pneg %p112
        $region22: #{tpu_custom_call.1} parent=11 // pred_check_branch
          %371 = sbr.rel (%p369) target = $region24
        $region23: #{tpu_custom_call.1} parent=11 // pred_region
          _
        $region24: #{tpu_custom_call.1} parent=11 // pred_fallthru
          _
        // Predicated region
        $region25: #{tpu_custom_call.1} parent=11 // pred_check
          %p372 = pneg %p133
        $region26: #{tpu_custom_call.1} parent=11 // pred_check_branch
          %374 = sbr.rel (%p372) target = $region28
        $region27: #{tpu_custom_call.1} parent=11 // pred_region
          _
        $region28: #{tpu_custom_call.1} parent=11 // pred_fallthru
          _
        // Predicated region
        $region29: #{tpu_custom_call.1} parent=11 // pred_check
          %p375 = pneg %p154
        $region30: #{tpu_custom_call.1} parent=11 // pred_check_branch
          %377 = sbr.rel (%p375) target = $region32
        $region31: #{tpu_custom_call.1} parent=11 // pred_region
          _
        $region32: #{tpu_custom_call.1} parent=11 // pred_fallthru
          _
        // Predicated region
        $region33: #{tpu_custom_call.1} parent=11 // pred_check
          %p378 = pneg %p175
        $region34: #{tpu_custom_call.1} parent=11 // pred_check_branch
          %380 = sbr.rel (%p378) target = $region36
        $region35: #{tpu_custom_call.1} parent=11 // pred_region
          _
        $region36: #{tpu_custom_call.1} parent=11 // pred_fallthru
          _
        // Predicated region
        $region37: #{tpu_custom_call.1} parent=11 // pred_check
          %p381 = pneg %p196
        $region38: #{tpu_custom_call.1} parent=11 // pred_check_branch
          %383 = sbr.rel (%p381) target = $region40
        $region39: #{tpu_custom_call.1} parent=11 // pred_region
          _
        $region40: #{tpu_custom_call.1} parent=11 // pred_fallthru
          _
        // Predicated region
        $region41: #{tpu_custom_call.1} parent=11 // pred_check
          %p384 = pneg %p217
        $region42: #{tpu_custom_call.1} parent=11 // pred_check_branch
          %386 = sbr.rel (%p384) target = $region44
        $region43: #{tpu_custom_call.1} parent=11 // pred_region
          _
        $region44: #{tpu_custom_call.1} parent=11 // pred_fallthru
          _
        // Predicated region
        $region45: #{tpu_custom_call.1} parent=11 // pred_check
          %p387 = pneg %p238
        $region46: #{tpu_custom_call.1} parent=11 // pred_check_branch
          %389 = sbr.rel (%p387) target = $region48
        $region47: #{tpu_custom_call.1} parent=11 // pred_region
          _
        $region48: #{tpu_custom_call.1} parent=11 // pred_fallthru
          _
        // Predicated region
        $region49: #{tpu_custom_call.1} parent=11 // pred_check
          %p390 = pneg %p259
        $region50: #{tpu_custom_call.1} parent=11 // pred_check_branch
          %392 = sbr.rel (%p390) target = $region52
        $region51: #{tpu_custom_call.1} parent=11 // pred_region
          _
        $region52: #{tpu_custom_call.1} parent=11 // pred_fallthru
          _
        // Predicated region
        $region53: #{tpu_custom_call.1} parent=11 // pred_check
          %p393 = pneg %p280
        $region54: #{tpu_custom_call.1} parent=11 // pred_check_branch
          %395 = sbr.rel (%p393) target = $region56
        $region55: #{tpu_custom_call.1} parent=11 // pred_region
          _
        $region56: #{tpu_custom_call.1} parent=11 // pred_fallthru
          _
        // Predicated region
        $region57: #{tpu_custom_call.1} parent=11 // pred_check
          %p396 = pneg %p301
        $region58: #{tpu_custom_call.1} parent=11 // pred_check_branch
          %398 = sbr.rel (%p396) target = $region60
        $region59: #{tpu_custom_call.1} parent=11 // pred_region
          _
        $region60: #{tpu_custom_call.1} parent=11 // pred_fallthru
          _
        // Predicated region
        $region61: #{tpu_custom_call.1} parent=11 // pred_check
          %p399 = pneg %p322
        $region62: #{tpu_custom_call.1} parent=11 // pred_check_branch
          %401 = sbr.rel (%p399) target = $region64
        $region63: #{tpu_custom_call.1} parent=11 // pred_region
          _
        $region64: #{tpu_custom_call.1} parent=11 // pred_fallthru
          _
      $region12: #{tpu_custom_call.1} parent=5 // pred_fallthru
        _
      %p402 = scmp.lt.s32.totalorder %s23, 2
      // Predicated region
      $region65: #{tpu_custom_call.1} parent=5 // pred_check
        %p403 = pneg %p402
      $region66: #{tpu_custom_call.1} parent=5 // pred_check_branch
        %405 = sbr.rel (%p403) target = $region68
      $region67: #{tpu_custom_call.1} parent=5 // pred_region
        // Predicated region
        $region69: #{tpu_custom_call.1} parent=67 // pred_check
          %p406 = pneg %p43
        $region70: #{tpu_custom_call.1} parent=67 // pred_check_branch
          %408 = sbr.rel (%p406) target = $region72
        $region71: #{tpu_custom_call.1} parent=67 // pred_region
          %p409 = scmp.lt.s32.totalorder %s23, 1
          %s410 = scalar_select %p409, %s23, 1
          %s411 = smul.addr %s410, 8
          %s412 = smul.addr %s411, 8
          %s413 = scalar_lea.vmem %s0, %s412
        $region72: #{tpu_custom_call.1} parent=67 // pred_fallthru
          _
      $region68: #{tpu_custom_call.1} parent=5 // pred_fallthru
        _
      %p414 = scmp.le.s32.totalorder 1, %s23
      %p415 = scmp.lt.s32.totalorder %s23, 3
      %p416 = pnand %p414, %p415
      %p417 = pneg %p416
      // Predicated region
      $region73: #{tpu_custom_call.1} parent=5 // pred_check
        _
      $region74: #{tpu_custom_call.1} parent=5 // pred_check_branch
        %419 = sbr.rel (%p416) target = $region76
      $region75: #{tpu_custom_call.1} parent=5 // pred_region
        %s420 = ssub.s32 %s23, 1
        %p421 = scmp.lt.s32.totalorder %s28, 1
        %s422 = scalar_select %p421, %s28, 1
        %s423 = smul.addr %s422, 8
        %s424 = smul.addr %s423, 8
        %s425 = scalar_lea.vmem %s0, %s424
        %p426 = pneg %p49
        %p427 = pneg %p46
        %p428 = pneg %p70
        %p429 = pneg %p67
        %p430 = pneg %p91
        %p431 = pneg %p88
        %p432 = pneg %p112
        %p433 = pneg %p109
        %p434 = pneg %p133
        %p435 = pneg %p130
        %p436 = pneg %p154
        %p437 = pneg %p151
        %p438 = pneg %p175
        %p439 = pneg %p172
        %p440 = pneg %p196
        %p441 = pneg %p193
        %p442 = pneg %p217
        %p443 = pneg %p214
        %p444 = pneg %p238
        %p445 = pneg %p235
        %p446 = pneg %p259
        %p447 = pneg %p256
        %p448 = pneg %p280
        %p449 = pneg %p277
        %p450 = pneg %p301
        %p451 = pneg %p298
        %p452 = pneg %p322
        %p453 = pneg %p319
        %p454 = pneg %p348
        %p455 = pneg %p345
        %s456 = sand.u32 %s335, 1
        %s457 = scalar_lea.sflag [#allocation4], %s456
        %s458 = sand.u32 %s335, 1
        %s459 = smul.addr %s458, 32
        %s460 = scalar_lea.vmem [#allocation3], %s459
        %p461 = scmp.lt.s32.totalorder %s28, 1
        %s462 = scalar_select %p461, %s28, 1
        %s463 = smul.addr %s462, 8
        %s464 = smul.addr %s463, 8
        %s465 = scalar_lea.vmem %s0, %s464
        %vm467 = vcmask 261120
        %468 = vst.msk [vmem:[#allocation2] sm:$0xff] %vm467, 0.0
        %469 = vst.msk [vmem:[#allocation2 + $0x8] sm:$0xff] %vm467, 0.0
        %470 = vst.msk [vmem:[#allocation2 + $0x10] sm:$0xff] %vm467, 0.0
        %471 = vst.msk [vmem:[#allocation2 + $0x18] sm:$0xff] %vm467, 0.0
        %v472 = vld [vmem:[%s465] sm:$0xff]
        %v473 = vld [vmem:[%s465 + $0x8] sm:$0xff]
        %v474 = vld [vmem:[%s465 + $0x10] sm:$0xff]
        %v475 = vld [vmem:[%s465 + $0x18] sm:$0xff]
        %v476 = vld [vmem:[%s465 + $0x20] sm:$0xff]
        %v477 = vld [vmem:[%s465 + $0x28] sm:$0xff]
        %v478 = vld [vmem:[%s465 + $0x30] sm:$0xff]
        %v479 = vld [vmem:[%s465 + $0x38] sm:$0xff]
        %v480 = vld [vmem:[#allocation2] sm:$0xff]
        %v481 = vld [vmem:[#allocation2 + $0x8] sm:$0xff]
        %v482 = vld [vmem:[#allocation2 + $0x10] sm:$0xff]
        %v483 = vld [vmem:[#allocation2 + $0x18] sm:$0xff]
        %v484 = vld [vmem:[%s1] sm:$0xf]
        %v485 = vld [vmem:[%s1 + $0x4] sm:$0xf]
        %v486 = vld [vmem:[%s1 + $0x8] sm:$0xf]
        %v487 = vld [vmem:[%s1 + $0xc] sm:$0xf]
        %v488 = vld [vmem:[%s1 + $0x10] sm:$0xf]
        %v489 = vld [vmem:[%s1 + $0x14] sm:$0xf]
        %v490 = vld [vmem:[%s1 + $0x18] sm:$0xf]
        %v491 = vld [vmem:[%s1 + $0x1c] sm:$0xf]
        %v492 = vld [vmem:[%s2] sm:$0xff]
        %v493 = vld [vmem:[%s2 + $0x8] sm:$0xff]
        %v494 = vld [vmem:[%s2 + $0x10] sm:$0xff]
        %v495 = vld [vmem:[%s2 + $0x18] sm:$0xff]
        %v496 = vld [vmem:[%s2 + $0x20] sm:$0xff]
        %v497 = vld [vmem:[%s2 + $0x28] sm:$0xff]
        %v498 = vld [vmem:[%s2 + $0x30] sm:$0xff]
        %v499 = vld [vmem:[%s2 + $0x38] sm:$0xff]
        %v500 = vld [vmem:[%s3] sm:$0xff]
        %v501 = vld [vmem:[%s3 + $0x8] sm:$0xff]
        %v502 = vld [vmem:[%s3 + $0x10] sm:$0xff]
        %v503 = vld [vmem:[%s3 + $0x18] sm:$0xff]
        %v504 = vld [vmem:[%s3 + $0x20] sm:$0xff]
        %v505 = vld [vmem:[%s3 + $0x28] sm:$0xff]
        %v506 = vld [vmem:[%s3 + $0x30] sm:$0xff]
        %v507 = vld [vmem:[%s3 + $0x38] sm:$0xff]
        %v508 = vld [vmem:[%s4] sm:$0xff]
        %v509 = vld [vmem:[%s4 + $0x8] sm:$0xff]
        %v510 = vld [vmem:[%s4 + $0x10] sm:$0xff]
        %v511 = vld [vmem:[%s4 + $0x18] sm:$0xff]
        %v512 = vld [vmem:[%s4 + $0x20] sm:$0xff]
        %v513 = vld [vmem:[%s4 + $0x28] sm:$0xff]
        %v514 = vld [vmem:[%s4 + $0x30] sm:$0xff]
        %v515 = vld [vmem:[%s4 + $0x38] sm:$0xff]
        %v516 = vld [vmem:[%s5] sm:$0xf]
        %v517 = vld [vmem:[%s5 + $0x4] sm:$0xf]
        %v518 = vld [vmem:[%s5 + $0x8] sm:$0xf]
        %v519 = vld [vmem:[%s5 + $0xc] sm:$0xf]
        %v520 = vld [vmem:[%s5 + $0x10] sm:$0xf]
        %v521 = vld [vmem:[%s5 + $0x14] sm:$0xf]
        %v522 = vld [vmem:[%s5 + $0x18] sm:$0xf]
        %v523 = vld [vmem:[%s5 + $0x1c] sm:$0xf]
        %v524 = vld [vmem:[%s6] sm:$0xf]
        %v525 = vld [vmem:[%s6 + $0x4] sm:$0xf]
        %v526 = vld [vmem:[%s6 + $0x8] sm:$0xf]
        %v527 = vld [vmem:[%s6 + $0xc] sm:$0xf]
        %v528 = vld [vmem:[%s6 + $0x10] sm:$0xf]
        %v529 = vld [vmem:[%s6 + $0x14] sm:$0xf]
        %v530 = vld [vmem:[%s6 + $0x18] sm:$0xf]
        %v531 = vld [vmem:[%s6 + $0x1c] sm:$0xf]
        %v532 = vpack.c.bf16 %v474, %v472
        %v533 = vpack.c.bf16 %v475, %v473
        %v534 = vpack.c.bf16 %v478, %v476
        %v535 = vpack.c.bf16 %v479, %v477
        %537 = vset.pattern.permute.xlu0 0
        %538 = vperm.xlu0 %537, %v492
        %v539 = vpop.permute.xlu0 %538
        %542 = vset.pattern.permute.xlu0 0
        %543 = vperm.xlu0 %542, %v493
        %v544 = vpop.permute.xlu0 %543
        %547 = vset.pattern.permute.xlu0 0
        %548 = vperm.xlu0 %547, %v494
        %v549 = vpop.permute.xlu0 %548
        %552 = vset.pattern.permute.xlu0 0
        %553 = vperm.xlu0 %552, %v495
        %v554 = vpop.permute.xlu0 %553
        %557 = vset.pattern.permute.xlu0 0
        %558 = vperm.xlu0 %557, %v496
        %v559 = vpop.permute.xlu0 %558
        %562 = vset.pattern.permute.xlu0 0
        %563 = vperm.xlu0 %562, %v497
        %v564 = vpop.permute.xlu0 %563
        %567 = vset.pattern.permute.xlu0 0
        %568 = vperm.xlu0 %567, %v498
        %v569 = vpop.permute.xlu0 %568
        %572 = vset.pattern.permute.xlu0 0
        %573 = vperm.xlu0 %572, %v499
        %v574 = vpop.permute.xlu0 %573
        %v584 = vunpack.c.l.b16 %v484
        %v585 = vunpack.c.l.b16 %v485
        %v586 = vunpack.c.l.b16 %v486
        %v587 = vunpack.c.l.b16 %v487
        %v588 = vunpack.c.l.b16 %v488
        %v589 = vunpack.c.l.b16 %v489
        %v590 = vunpack.c.l.b16 %v490
        %v591 = vunpack.c.l.b16 %v491
        %v592 = vpack.c.b16 %v585, %v584
        %v593 = vpack.c.b16 %v587, %v586
        %v594 = vpack.c.b16 %v589, %v588
        %v595 = vpack.c.b16 %v591, %v590
        %v597 = vsel %vm467, %v592, 0
        %v600 = vsel %vm467, %v593, 0
        %v603 = vsel %vm467, %v594, 0
        %v606 = vsel %vm467, %v595, 0
        %608 = vmatprep.subr.bf16.mxu0 0
        %609 = vmatpush1.bf16.msra.mxu0 0
        %610 = vmatprep.subr.bf16.mxu0 0
        %611 = vmatpush1.bf16.msra.mxu0 0
        %612 = vmatprep.subr.bf16.mxu0 0
        %613 = vmatpush1.bf16.msra.mxu0 0
        %614 = vmatprep.subr.bf16.mxu0 0
        %615 = vmatpush1.bf16.msra.mxu0 0
        %616 = vmatprep.subr.bf16.mxu0 0
        %617 = vmatpush1.bf16.msra.mxu0 0
        %618 = vmatprep.subr.bf16.mxu0 0
        %619 = vmatpush1.bf16.msra.mxu0 0
        %620 = vmatprep.subr.bf16.mxu0 %v535
        %621 = vmatpush1.bf16.msra.mxu0 %v534
        %622 = vmatprep.subr.bf16.mxu0 %v533
        %623 = vmatpush1.bf16.msra.mxu0 %v532
        %624 = vmatprep.subr.bf16.mxu0 0
        %625 = vmatpush2.bf16.msra.mxu0 0
        %626 = vmatprep.subr.bf16.mxu0 0
        %627 = vmatpush2.bf16.msra.mxu0 0
        %628 = vmatprep.subr.bf16.mxu0 0
        %629 = vmatpush2.bf16.msra.mxu0 0
        %630 = vmatprep.subr.bf16.mxu0 0
        %631 = vmatpush2.bf16.msra.mxu0 0
        %632 = vmatprep.subr.bf16.mxu0 0
        %633 = vmatpush2.bf16.msra.mxu0 0
        %634 = vmatprep.subr.bf16.mxu0 0
        %635 = vmatpush2.bf16.msra.mxu0 0
        %636 = vmatprep.subr.bf16.mxu0 0
        %637 = vmatpush2.bf16.msra.mxu0 0
        %638 = vmatprep.subr.bf16.mxu0 0
        %639 = vmatpush2.bf16.msra.mxu0 0
        %640 = vmatprep.mubr.bf16.mxu0 0
        %641 = vmatmul.mubr.bf16.gmra.mxu0 %v597
        %v642 = vpop.f32.mrf.mxu0
        %v643 = vadd.f32 %v539, %v642
        %v644 = vpop.f32.mrf.mxu0
        %v645 = vadd.f32 %v539, %v644
        %v646 = vpop.f32.mrf.mxu0
        %v647 = vadd.f32 %v544, %v646
        %v648 = vpop.f32.mrf.mxu0
        %v649 = vadd.f32 %v544, %v648
        %650 = vmatprep.mubr.bf16.mxu0 0
        %651 = vmatmul.mubr.bf16.gmra.mxu0 %v600
        %v652 = vpop.f32.mrf.mxu0
        %v653 = vadd.f32 %v549, %v652
        %v654 = vpop.f32.mrf.mxu0
        %v655 = vadd.f32 %v549, %v654
        %v656 = vpop.f32.mrf.mxu0
        %v657 = vadd.f32 %v554, %v656
        %v658 = vpop.f32.mrf.mxu0
        %v659 = vadd.f32 %v554, %v658
        %660 = vmatprep.mubr.bf16.mxu0 0
        %661 = vmatmul.mubr.bf16.gmra.mxu0 %v603
        %v662 = vpop.f32.mrf.mxu0
        %v663 = vadd.f32 %v559, %v662
        %v664 = vpop.f32.mrf.mxu0
        %v665 = vadd.f32 %v559, %v664
        %v666 = vpop.f32.mrf.mxu0
        %v667 = vadd.f32 %v564, %v666
        %v668 = vpop.f32.mrf.mxu0
        %v669 = vadd.f32 %v564, %v668
        %670 = vmatprep.mubr.bf16.mxu0 0
        %671 = vmatmul.mubr.bf16.gmra.mxu0 %v606
        %v672 = vpop.f32.mrf.mxu0
        %v673 = vadd.f32 %v569, %v672
        %v674 = vpop.f32.mrf.mxu0
        %v675 = vadd.f32 %v569, %v674
        %v676 = vpop.f32.mrf.mxu0
        %v677 = vadd.f32 %v574, %v676
        %v678 = vpop.f32.mrf.mxu0
        %v679 = vadd.f32 %v574, %v678
        %680 = vdwg.mxu0
        %v681 = vpack.c.bf16 %v647, %v643
        %v682 = vpack.c.bf16 %v649, %v645
        %v683 = vpack.c.bf16 %v657, %v653
        %v684 = vpack.c.bf16 %v659, %v655
        %v685 = vpack.c.bf16 %v667, %v663
        %v686 = vpack.c.bf16 %v669, %v665
        %v687 = vpack.c.bf16 %v677, %v673
        %v688 = vpack.c.bf16 %v679, %v675
        %v697 = vunpack.c.l.b16 %v516
        %v698 = vunpack.c.l.b16 %v517
        %v699 = vunpack.c.l.b16 %v518
        %v700 = vunpack.c.l.b16 %v519
        %v701 = vunpack.c.l.b16 %v520
        %v702 = vunpack.c.l.b16 %v521
        %v703 = vunpack.c.l.b16 %v522
        %v704 = vunpack.c.l.b16 %v523
        %v705 = vpack.c.b16 %v698, %v697
        %v706 = vpack.c.b16 %v700, %v699
        %v707 = vpack.c.b16 %v702, %v701
        %v708 = vpack.c.b16 %v704, %v703
        %vm709 = vcmask 523264
        %v711 = vsel %vm709, %v705, 0
        %v714 = vsel %vm709, %v706, 0
        %v717 = vsel %vm709, %v707, 0
        %v720 = vsel %vm709, %v708, 0
        %722 = vmatprep.subr.bf16.mxu0 0
        %723 = vmatpush1.bf16.msra.mxu0 0
        %724 = vmatprep.subr.bf16.mxu0 0
        %725 = vmatpush1.bf16.msra.mxu0 0
        %726 = vmatprep.subr.bf16.mxu0 0
        %727 = vmatpush1.bf16.msra.mxu0 0
        %728 = vmatprep.subr.bf16.mxu0 0
        %729 = vmatpush1.bf16.msra.mxu0 0
        %730 = vmatprep.subr.bf16.mxu0 %v688
        %731 = vmatpush1.bf16.msra.mxu0 %v687
        %732 = vmatprep.subr.bf16.mxu0 %v686
        %733 = vmatpush1.bf16.msra.mxu0 %v685
        %734 = vmatprep.subr.bf16.mxu0 %v684
        %735 = vmatpush1.bf16.msra.mxu0 %v683
        %736 = vmatprep.subr.bf16.mxu0 %v682
        %737 = vmatpush1.bf16.msra.mxu0 %v681
        %738 = vmatprep.subr.bf16.mxu0 0
        %739 = vmatpush2.bf16.msra.mxu0 0
        %740 = vmatprep.subr.bf16.mxu0 0
        %741 = vmatpush2.bf16.msra.mxu0 0
        %742 = vmatprep.subr.bf16.mxu0 0
        %743 = vmatpush2.bf16.msra.mxu0 0
        %744 = vmatprep.subr.bf16.mxu0 0
        %745 = vmatpush2.bf16.msra.mxu0 0
        %746 = vmatprep.subr.bf16.mxu0 0
        %747 = vmatpush2.bf16.msra.mxu0 0
        %748 = vmatprep.subr.bf16.mxu0 0
        %749 = vmatpush2.bf16.msra.mxu0 0
        %750 = vmatprep.subr.bf16.mxu0 0
        %751 = vmatpush2.bf16.msra.mxu0 0
        %752 = vmatprep.subr.bf16.mxu0 0
        %753 = vmatpush2.bf16.msra.mxu0 0
        %754 = vmatprep.mubr.bf16.mxu0 0
        %755 = vmatmul.mubr.bf16.gmra.mxu0 %v711
        %v756 = vpop.f32.mrf.mxu0
        %v757 = vadd.f32 0.0, %v756
        %v758 = vpop.f32.mrf.mxu0
        %v759 = vadd.f32 0.0, %v758
        %v760 = vpop.f32.mrf.mxu0
        %v761 = vadd.f32 0.0, %v760
        %v762 = vpop.f32.mrf.mxu0
        %v763 = vadd.f32 0.0, %v762
        %764 = vmatprep.mubr.bf16.mxu0 0
        %765 = vmatmul.mubr.bf16.gmra.mxu0 %v714
        %v766 = vpop.f32.mrf.mxu0
        %v767 = vadd.f32 0.0, %v766
        %v768 = vpop.f32.mrf.mxu0
        %v769 = vadd.f32 0.0, %v768
        %v770 = vpop.f32.mrf.mxu0
        %v771 = vadd.f32 0.0, %v770
        %v772 = vpop.f32.mrf.mxu0
        %v773 = vadd.f32 0.0, %v772
        %774 = vmatprep.mubr.bf16.mxu0 0
        %775 = vmatmul.mubr.bf16.gmra.mxu0 %v717
        %v776 = vpop.f32.mrf.mxu0
        %v777 = vadd.f32 0.0, %v776
        %v778 = vpop.f32.mrf.mxu0
        %v779 = vadd.f32 0.0, %v778
        %v780 = vpop.f32.mrf.mxu0
        %v781 = vadd.f32 0.0, %v780
        %v782 = vpop.f32.mrf.mxu0
        %v783 = vadd.f32 0.0, %v782
        %784 = vmatprep.mubr.bf16.mxu0 0
        %785 = vmatmul.mubr.bf16.gmra.mxu0 %v720
        %v786 = vpop.f32.mrf.mxu0
        %v787 = vadd.f32 0.0, %v786
        %v788 = vpop.f32.mrf.mxu0
        %v789 = vadd.f32 0.0, %v788
        %v790 = vpop.f32.mrf.mxu0
        %v791 = vadd.f32 0.0, %v790
        %v792 = vpop.f32.mrf.mxu0
        %v793 = vadd.f32 0.0, %v792
        %794 = vdwg.mxu0
        %v795 = vsub.f32 %v643, %v757
        %v796 = vsub.f32 %v645, %v759
        %v797 = vsub.f32 %v647, %v761
        %v798 = vsub.f32 %v649, %v763
        %v799 = vsub.f32 %v653, %v767
        %v800 = vsub.f32 %v655, %v769
        %v801 = vsub.f32 %v657, %v771
        %v802 = vsub.f32 %v659, %v773
        %v803 = vsub.f32 %v663, %v777
        %v804 = vsub.f32 %v665, %v779
        %v805 = vsub.f32 %v667, %v781
        %v806 = vsub.f32 %v669, %v783
        %v807 = vsub.f32 %v673, %v787
        %v808 = vsub.f32 %v675, %v789
        %v809 = vsub.f32 %v677, %v791
        %v810 = vsub.f32 %v679, %v793
        %v811 = vmul.f32 %v795, %v795
        %v812 = vmul.f32 %v796, %v796
        %v813 = vmul.f32 %v797, %v797
        %v814 = vmul.f32 %v798, %v798
        %v815 = vmul.f32 %v799, %v799
        %v816 = vmul.f32 %v800, %v800
        %v817 = vmul.f32 %v801, %v801
        %v818 = vmul.f32 %v802, %v802
        %v819 = vmul.f32 %v803, %v803
        %v820 = vmul.f32 %v804, %v804
        %v821 = vmul.f32 %v805, %v805
        %v822 = vmul.f32 %v806, %v806
        %v823 = vmul.f32 %v807, %v807
        %v824 = vmul.f32 %v808, %v808
        %v825 = vmul.f32 %v809, %v809
        %v826 = vmul.f32 %v810, %v810
        %v827 = vpack.c.bf16 %v813, %v811
        %v828 = vpack.c.bf16 %v814, %v812
        %v829 = vpack.c.bf16 %v817, %v815
        %v830 = vpack.c.bf16 %v818, %v816
        %v831 = vpack.c.bf16 %v821, %v819
        %v832 = vpack.c.bf16 %v822, %v820
        %v833 = vpack.c.bf16 %v825, %v823
        %v834 = vpack.c.bf16 %v826, %v824
        %v843 = vunpack.c.l.b16 %v524
        %v844 = vunpack.c.l.b16 %v525
        %v845 = vunpack.c.l.b16 %v526
        %v846 = vunpack.c.l.b16 %v527
        %v847 = vunpack.c.l.b16 %v528
        %v848 = vunpack.c.l.b16 %v529
        %v849 = vunpack.c.l.b16 %v530
        %v850 = vunpack.c.l.b16 %v531
        %v851 = vpack.c.b16 %v844, %v843
        %v852 = vpack.c.b16 %v846, %v845
        %v853 = vpack.c.b16 %v848, %v847
        %v854 = vpack.c.b16 %v850, %v849
        %v856 = vsel %vm709, %v851, 0
        %v859 = vsel %vm709, %v852, 0
        %v862 = vsel %vm709, %v853, 0
        %v865 = vsel %vm709, %v854, 0
        %867 = vmatprep.subr.bf16.mxu0 0
        %868 = vmatpush1.bf16.msra.mxu0 0
        %869 = vmatprep.subr.bf16.mxu0 0
        %870 = vmatpush1.bf16.msra.mxu0 0
        %871 = vmatprep.subr.bf16.mxu0 0
        %872 = vmatpush1.bf16.msra.mxu0 0
        %873 = vmatprep.subr.bf16.mxu0 0
        %874 = vmatpush1.bf16.msra.mxu0 0
        %875 = vmatprep.subr.bf16.mxu0 %v834
        %876 = vmatpush1.bf16.msra.mxu0 %v833
        %877 = vmatprep.subr.bf16.mxu0 %v832
        %878 = vmatpush1.bf16.msra.mxu0 %v831
        %879 = vmatprep.subr.bf16.mxu0 %v830
        %880 = vmatpush1.bf16.msra.mxu0 %v829
        %881 = vmatprep.subr.bf16.mxu0 %v828
        %882 = vmatpush1.bf16.msra.mxu0 %v827
        %883 = vmatprep.subr.bf16.mxu0 0
        %884 = vmatpush2.bf16.msra.mxu0 0
        %885 = vmatprep.subr.bf16.mxu0 0
        %886 = vmatpush2.bf16.msra.mxu0 0
        %887 = vmatprep.subr.bf16.mxu0 0
        %888 = vmatpush2.bf16.msra.mxu0 0
        %889 = vmatprep.subr.bf16.mxu0 0
        %890 = vmatpush2.bf16.msra.mxu0 0
        %891 = vmatprep.subr.bf16.mxu0 0
        %892 = vmatpush2.bf16.msra.mxu0 0
        %893 = vmatprep.subr.bf16.mxu0 0
        %894 = vmatpush2.bf16.msra.mxu0 0
        %895 = vmatprep.subr.bf16.mxu0 0
        %896 = vmatpush2.bf16.msra.mxu0 0
        %897 = vmatprep.subr.bf16.mxu0 0
        %898 = vmatpush2.bf16.msra.mxu0 0
        %899 = vmatprep.mubr.bf16.mxu0 0
        %900 = vmatmul.mubr.bf16.gmra.mxu0 %v856
        %v901 = vpop.f32.mrf.mxu0
        %v902 = vadd.f32 0.0, %v901
        %v903 = vpop.f32.mrf.mxu0
        %v904 = vadd.f32 0.0, %v903
        %v905 = vpop.f32.mrf.mxu0
        %v906 = vadd.f32 0.0, %v905
        %v907 = vpop.f32.mrf.mxu0
        %v908 = vadd.f32 0.0, %v907
        %909 = vmatprep.mubr.bf16.mxu0 0
        %910 = vmatmul.mubr.bf16.gmra.mxu0 %v859
        %v911 = vpop.f32.mrf.mxu0
        %v912 = vadd.f32 0.0, %v911
        %v913 = vpop.f32.mrf.mxu0
        %v914 = vadd.f32 0.0, %v913
        %v915 = vpop.f32.mrf.mxu0
        %v916 = vadd.f32 0.0, %v915
        %v917 = vpop.f32.mrf.mxu0
        %v918 = vadd.f32 0.0, %v917
        %919 = vmatprep.mubr.bf16.mxu0 0
        %920 = vmatmul.mubr.bf16.gmra.mxu0 %v862
        %v921 = vpop.f32.mrf.mxu0
        %v922 = vadd.f32 0.0, %v921
        %v923 = vpop.f32.mrf.mxu0
        %v924 = vadd.f32 0.0, %v923
        %v925 = vpop.f32.mrf.mxu0
        %v926 = vadd.f32 0.0, %v925
        %v927 = vpop.f32.mrf.mxu0
        %v928 = vadd.f32 0.0, %v927
        %929 = vmatprep.mubr.bf16.mxu0 0
        %930 = vmatmul.mubr.bf16.gmra.mxu0 %v865
        %v931 = vpop.f32.mrf.mxu0
        %v932 = vadd.f32 0.0, %v931
        %v933 = vpop.f32.mrf.mxu0
        %v934 = vadd.f32 0.0, %v933
        %v935 = vpop.f32.mrf.mxu0
        %v936 = vadd.f32 0.0, %v935
        %v937 = vpop.f32.mrf.mxu0
        %v938 = vadd.f32 0.0, %v937
        %939 = vdwg.mxu0
        %v940 = vrsqrt.pop %v902
        %v941 = vmul.f32 %v902, %v940
        %vm942 = vcmp.eq.f32.partialorder %v902, inf
        %v943 = vsel %vm942, %v902, %v941
        %vm944 = vcmp.eq.f32.partialorder %v902, 0.0
        %v945 = vand.u32 %v902, 2147483648
        %v946 = vsel %vm944, %v945, %v943
        %v947 = vrsqrt.pop %v904
        %v948 = vmul.f32 %v904, %v947
        %vm949 = vcmp.eq.f32.partialorder %v904, inf
        %v950 = vsel %vm949, %v904, %v948
        %vm951 = vcmp.eq.f32.partialorder %v904, 0.0
        %v952 = vand.u32 %v904, 2147483648
        %v953 = vsel %vm951, %v952, %v950
        %v954 = vrsqrt.pop %v906
        %v955 = vmul.f32 %v906, %v954
        %vm956 = vcmp.eq.f32.partialorder %v906, inf
        %v957 = vsel %vm956, %v906, %v955
        %vm958 = vcmp.eq.f32.partialorder %v906, 0.0
        %v959 = vand.u32 %v906, 2147483648
        %v960 = vsel %vm958, %v959, %v957
        %v961 = vrsqrt.pop %v908
        %v962 = vmul.f32 %v908, %v961
        %vm963 = vcmp.eq.f32.partialorder %v908, inf
        %v964 = vsel %vm963, %v908, %v962
        %vm965 = vcmp.eq.f32.partialorder %v908, 0.0
        %v966 = vand.u32 %v908, 2147483648
        %v967 = vsel %vm965, %v966, %v964
        %v968 = vrsqrt.pop %v912
        %v969 = vmul.f32 %v912, %v968
        %vm970 = vcmp.eq.f32.partialorder %v912, inf
        %v971 = vsel %vm970, %v912, %v969
        %vm972 = vcmp.eq.f32.partialorder %v912, 0.0
        %v973 = vand.u32 %v912, 2147483648
        %v974 = vsel %vm972, %v973, %v971
        %v975 = vrsqrt.pop %v914
        %v976 = vmul.f32 %v914, %v975
        %vm977 = vcmp.eq.f32.partialorder %v914, inf
        %v978 = vsel %vm977, %v914, %v976
        %vm979 = vcmp.eq.f32.partialorder %v914, 0.0
        %v980 = vand.u32 %v914, 2147483648
        %v981 = vsel %vm979, %v980, %v978
        %v982 = vrsqrt.pop %v916
        %v983 = vmul.f32 %v916, %v982
        %vm984 = vcmp.eq.f32.partialorder %v916, inf
        %v985 = vsel %vm984, %v916, %v983
        %vm986 = vcmp.eq.f32.partialorder %v916, 0.0
        %v987 = vand.u32 %v916, 2147483648
        %v988 = vsel %vm986, %v987, %v985
        %v989 = vrsqrt.pop %v918
        %v990 = vmul.f32 %v918, %v989
        %vm991 = vcmp.eq.f32.partialorder %v918, inf
        %v992 = vsel %vm991, %v918, %v990
        %vm993 = vcmp.eq.f32.partialorder %v918, 0.0
        %v994 = vand.u32 %v918, 2147483648
        %v995 = vsel %vm993, %v994, %v992
        %v996 = vrsqrt.pop %v922
        %v997 = vmul.f32 %v922, %v996
        %vm998 = vcmp.eq.f32.partialorder %v922, inf
        %v999 = vsel %vm998, %v922, %v997
        %vm1000 = vcmp.eq.f32.partialorder %v922, 0.0
        %v1001 = vand.u32 %v922, 2147483648
        %v1002 = vsel %vm1000, %v1001, %v999
        %v1003 = vrsqrt.pop %v924
        %v1004 = vmul.f32 %v924, %v1003
        %vm1005 = vcmp.eq.f32.partialorder %v924, inf
        %v1006 = vsel %vm1005, %v924, %v1004
        %vm1007 = vcmp.eq.f32.partialorder %v924, 0.0
        %v1008 = vand.u32 %v924, 2147483648
        %v1009 = vsel %vm1007, %v1008, %v1006
        %v1010 = vrsqrt.pop %v926
        %v1011 = vmul.f32 %v926, %v1010
        %vm1012 = vcmp.eq.f32.partialorder %v926, inf
        %v1013 = vsel %vm1012, %v926, %v1011
        %vm1014 = vcmp.eq.f32.partialorder %v926, 0.0
        %v1015 = vand.u32 %v926, 2147483648
        %v1016 = vsel %vm1014, %v1015, %v1013
        %v1017 = vrsqrt.pop %v928
        %v1018 = vmul.f32 %v928, %v1017
        %vm1019 = vcmp.eq.f32.partialorder %v928, inf
        %v1020 = vsel %vm1019, %v928, %v1018
        %vm1021 = vcmp.eq.f32.partialorder %v928, 0.0
        %v1022 = vand.u32 %v928, 2147483648
        %v1023 = vsel %vm1021, %v1022, %v1020
        %v1024 = vrsqrt.pop %v932
        %v1025 = vmul.f32 %v932, %v1024
        %vm1026 = vcmp.eq.f32.partialorder %v932, inf
        %v1027 = vsel %vm1026, %v932, %v1025
        %vm1028 = vcmp.eq.f32.partialorder %v932, 0.0
        %v1029 = vand.u32 %v932, 2147483648
        %v1030 = vsel %vm1028, %v1029, %v1027
        %v1031 = vrsqrt.pop %v934
        %v1032 = vmul.f32 %v934, %v1031
        %vm1033 = vcmp.eq.f32.partialorder %v934, inf
        %v1034 = vsel %vm1033, %v934, %v1032
        %vm1035 = vcmp.eq.f32.partialorder %v934, 0.0
        %v1036 = vand.u32 %v934, 2147483648
        %v1037 = vsel %vm1035, %v1036, %v1034
        %v1038 = vrsqrt.pop %v936
        %v1039 = vmul.f32 %v936, %v1038
        %vm1040 = vcmp.eq.f32.partialorder %v936, inf
        %v1041 = vsel %vm1040, %v936, %v1039
        %vm1042 = vcmp.eq.f32.partialorder %v936, 0.0
        %v1043 = vand.u32 %v936, 2147483648
        %v1044 = vsel %vm1042, %v1043, %v1041
        %v1045 = vrsqrt.pop %v938
        %v1046 = vmul.f32 %v938, %v1045
        %vm1047 = vcmp.eq.f32.partialorder %v938, inf
        %v1048 = vsel %vm1047, %v938, %v1046
        %vm1049 = vcmp.eq.f32.partialorder %v938, 0.0
        %v1050 = vand.u32 %v938, 2147483648
        %v1051 = vsel %vm1049, %v1050, %v1048
        %v1052 = vadd.f32 %v946, 1e-05
        %v1053 = vadd.f32 %v953, 1e-05
        %v1054 = vadd.f32 %v960, 1e-05
        %v1055 = vadd.f32 %v967, 1e-05
        %v1056 = vadd.f32 %v974, 1e-05
        %v1057 = vadd.f32 %v981, 1e-05
        %v1058 = vadd.f32 %v988, 1e-05
        %v1059 = vadd.f32 %v995, 1e-05
        %v1060 = vadd.f32 %v1002, 1e-05
        %v1061 = vadd.f32 %v1009, 1e-05
        %v1062 = vadd.f32 %v1016, 1e-05
        %v1063 = vadd.f32 %v1023, 1e-05
        %v1064 = vadd.f32 %v1030, 1e-05
        %v1065 = vadd.f32 %v1037, 1e-05
        %v1066 = vadd.f32 %v1044, 1e-05
        %v1067 = vadd.f32 %v1051, 1e-05
        %v1068 = vrcp.pop %v1052
        %v1069 = vrcp.pop %v1053
        %v1070 = vrcp.pop %v1054
        %v1071 = vrcp.pop %v1055
        %v1072 = vrcp.pop %v1056
        %v1073 = vrcp.pop %v1057
        %v1074 = vrcp.pop %v1058
        %v1075 = vrcp.pop %v1059
        %v1076 = vrcp.pop %v1060
        %v1077 = vrcp.pop %v1061
        %v1078 = vrcp.pop %v1062
        %v1079 = vrcp.pop %v1063
        %v1080 = vrcp.pop %v1064
        %v1081 = vrcp.pop %v1065
        %v1082 = vrcp.pop %v1066
        %v1083 = vrcp.pop %v1067
        %v1084 = vmul.f32 %v795, %v1068
        %v1085 = vmul.f32 %v796, %v1069
        %v1086 = vmul.f32 %v797, %v1070
        %v1087 = vmul.f32 %v798, %v1071
        %v1088 = vmul.f32 %v799, %v1072
        %v1089 = vmul.f32 %v800, %v1073
        %v1090 = vmul.f32 %v801, %v1074
        %v1091 = vmul.f32 %v802, %v1075
        %v1092 = vmul.f32 %v803, %v1076
        %v1093 = vmul.f32 %v804, %v1077
        %v1094 = vmul.f32 %v805, %v1078
        %v1095 = vmul.f32 %v806, %v1079
        %v1096 = vmul.f32 %v807, %v1080
        %v1097 = vmul.f32 %v808, %v1081
        %v1098 = vmul.f32 %v809, %v1082
        %v1099 = vmul.f32 %v810, %v1083
        %1101 = vset.pattern.permute.xlu0 0
        %1102 = vperm.xlu0 %1101, %v500
        %v1103 = vpop.permute.xlu0 %1102
        %1106 = vset.pattern.permute.xlu0 0
        %1107 = vperm.xlu0 %1106, %v501
        %v1108 = vpop.permute.xlu0 %1107
        %1111 = vset.pattern.permute.xlu0 0
        %1112 = vperm.xlu0 %1111, %v502
        %v1113 = vpop.permute.xlu0 %1112
        %1116 = vset.pattern.permute.xlu0 0
        %1117 = vperm.xlu0 %1116, %v503
        %v1118 = vpop.permute.xlu0 %1117
        %1121 = vset.pattern.permute.xlu0 0
        %1122 = vperm.xlu0 %1121, %v504
        %v1123 = vpop.permute.xlu0 %1122
        %1126 = vset.pattern.permute.xlu0 0
        %1127 = vperm.xlu0 %1126, %v505
        %v1128 = vpop.permute.xlu0 %1127
        %1131 = vset.pattern.permute.xlu0 0
        %1132 = vperm.xlu0 %1131, %v506
        %v1133 = vpop.permute.xlu0 %1132
        %1136 = vset.pattern.permute.xlu0 0
        %1137 = vperm.xlu0 %1136, %v507
        %v1138 = vpop.permute.xlu0 %1137
        %v1140 = vmul.f32 %v1103, %v1084
        %v1141 = vmul.f32 %v1103, %v1085
        %v1142 = vmul.f32 %v1108, %v1086
        %v1143 = vmul.f32 %v1108, %v1087
        %v1144 = vmul.f32 %v1113, %v1088
        %v1145 = vmul.f32 %v1113, %v1089
        %v1146 = vmul.f32 %v1118, %v1090
        %v1147 = vmul.f32 %v1118, %v1091
        %v1148 = vmul.f32 %v1123, %v1092
        %v1149 = vmul.f32 %v1123, %v1093
        %v1150 = vmul.f32 %v1128, %v1094
        %v1151 = vmul.f32 %v1128, %v1095
        %v1152 = vmul.f32 %v1133, %v1096
        %v1153 = vmul.f32 %v1133, %v1097
        %v1154 = vmul.f32 %v1138, %v1098
        %v1155 = vmul.f32 %v1138, %v1099
        %1157 = vset.pattern.permute.xlu0 0
        %1158 = vperm.xlu0 %1157, %v508
        %v1159 = vpop.permute.xlu0 %1158
        %1162 = vset.pattern.permute.xlu0 0
        %1163 = vperm.xlu0 %1162, %v509
        %v1164 = vpop.permute.xlu0 %1163
        %1167 = vset.pattern.permute.xlu0 0
        %1168 = vperm.xlu0 %1167, %v510
        %v1169 = vpop.permute.xlu0 %1168
        %1172 = vset.pattern.permute.xlu0 0
        %1173 = vperm.xlu0 %1172, %v511
        %v1174 = vpop.permute.xlu0 %1173
        %1177 = vset.pattern.permute.xlu0 0
        %1178 = vperm.xlu0 %1177, %v512
        %v1179 = vpop.permute.xlu0 %1178
        %1182 = vset.pattern.permute.xlu0 0
        %1183 = vperm.xlu0 %1182, %v513
        %v1184 = vpop.permute.xlu0 %1183
        %1187 = vset.pattern.permute.xlu0 0
        %1188 = vperm.xlu0 %1187, %v514
        %v1189 = vpop.permute.xlu0 %1188
        %1192 = vset.pattern.permute.xlu0 0
        %1193 = vperm.xlu0 %1192, %v515
        %v1194 = vpop.permute.xlu0 %1193
        %v1196 = vadd.f32 %v1140, %v1159
        %v1197 = vadd.f32 %v1141, %v1159
        %v1198 = vadd.f32 %v1142, %v1164
        %v1199 = vadd.f32 %v1143, %v1164
        %v1200 = vadd.f32 %v1144, %v1169
        %v1201 = vadd.f32 %v1145, %v1169
        %v1202 = vadd.f32 %v1146, %v1174
        %v1203 = vadd.f32 %v1147, %v1174
        %v1204 = vadd.f32 %v1148, %v1179
        %v1205 = vadd.f32 %v1149, %v1179
        %v1206 = vadd.f32 %v1150, %v1184
        %v1207 = vadd.f32 %v1151, %v1184
        %v1208 = vadd.f32 %v1152, %v1189
        %v1209 = vadd.f32 %v1153, %v1189
        %v1210 = vadd.f32 %v1154, %v1194
        %v1211 = vadd.f32 %v1155, %v1194
        %v1212 = vpack.c.bf16 %v1198, %v1196
        %v1213 = vpack.c.bf16 %v1199, %v1197
        %v1214 = vpack.c.bf16 %v1202, %v1200
        %v1215 = vpack.c.bf16 %v1203, %v1201
        %v1216 = vpack.c.bf16 %v1206, %v1204
        %v1217 = vpack.c.bf16 %v1207, %v1205
        %v1218 = vpack.c.bf16 %v1210, %v1208
        %v1219 = vpack.c.bf16 %v1211, %v1209
        %1220 = vmatprep.subr.bf16.mxu0 0
        %1221 = vmatpush1.bf16.xpose.msra.mxu0 0
        %1222 = vmatprep.subr.bf16.mxu0 0
        %1223 = vmatpush1.bf16.xpose.msra.mxu0 0
        %1224 = vmatprep.subr.bf16.mxu0 0
        %1225 = vmatpush1.bf16.xpose.msra.mxu0 0
        %1226 = vmatprep.subr.bf16.mxu0 0
        %1227 = vmatpush1.bf16.xpose.msra.mxu0 0
        %1228 = vmatprep.subr.bf16.mxu0 0
        %1229 = vmatpush1.bf16.xpose.msra.mxu0 0
        %1230 = vmatprep.subr.bf16.mxu0 0
        %1231 = vmatpush1.bf16.xpose.msra.mxu0 0
        %1232 = vmatprep.subr.bf16.mxu0 %v1219
        %1233 = vmatpush1.bf16.xpose.msra.mxu0 %v1218
        %1234 = vmatprep.subr.bf16.mxu0 %v1217
        %1235 = vmatpush1.bf16.xpose.msra.mxu0 %v1216
        %1236 = vmatprep.subr.bf16.mxu0 0
        %1237 = vmatpush2.bf16.xpose.msra.mxu0 0
        %1238 = vmatprep.subr.bf16.mxu0 0
        %1239 = vmatpush2.bf16.xpose.msra.mxu0 0
        %1240 = vmatprep.subr.bf16.mxu0 0
        %1241 = vmatpush2.bf16.xpose.msra.mxu0 0
        %1242 = vmatprep.subr.bf16.mxu0 0
        %1243 = vmatpush2.bf16.xpose.msra.mxu0 0
        %1244 = vmatprep.subr.bf16.mxu0 0
        %1245 = vmatpush2.bf16.xpose.msra.mxu0 0
        %1246 = vmatprep.subr.bf16.mxu0 0
        %1247 = vmatpush2.bf16.xpose.msra.mxu0 0
        %1248 = vmatprep.subr.bf16.mxu0 0
        %1249 = vmatpush2.bf16.xpose.msra.mxu0 0
        %1250 = vmatprep.subr.bf16.mxu0 0
        %1251 = vmatpush2.bf16.xpose.msra.mxu0 0
        %1252 = vmatprep.mubr.bf16.mxu0 %v1213
        %1253 = vmatmul.mubr.bf16.gmra.mxu0 %v1212
        %v1254 = vpop.f32.mrf.mxu0
        %v1255 = vadd.f32 0.0, %v1254
        %v1256 = vpop.f32.mrf.mxu0
        %v1257 = vpop.f32.mrf.mxu0
        %v1258 = vadd.f32 0.0, %v1257
        %v1259 = vpop.f32.mrf.mxu0
        %1260 = vmatprep.mubr.bf16.mxu0 %v1215
        %1261 = vmatmul.mubr.bf16.gmra.mxu0 %v1214
        %v1262 = vpop.f32.mrf.mxu0
        %v1263 = vadd.f32 0.0, %v1262
        %v1264 = vpop.f32.mrf.mxu0
        %v1265 = vpop.f32.mrf.mxu0
        %v1266 = vadd.f32 0.0, %v1265
        %v1267 = vpop.f32.mrf.mxu0
        %1268 = vdwg.mxu0
        %v1269 = vadd.f32 %v480, %v1255
        %v1270 = vadd.f32 %v481, %v1258
        %v1271 = vadd.f32 %v482, %v1263
        %v1272 = vadd.f32 %v483, %v1266
        %1273 = vst.msk [vmem:[#allocation2] sm:$0xff] %vm467, %v1269
        %1274 = vst.msk [vmem:[#allocation2 + $0x8] sm:$0xff] %vm467, %v1270
        %1275 = vst.msk [vmem:[#allocation2 + $0x10] sm:$0xff] %vm467, %v1271
        %1276 = vst.msk [vmem:[#allocation2 + $0x18] sm:$0xff] %vm467, %v1272
        %v1277 = vld [vmem:[#allocation2] sm:$0xff]
        %v1278 = vld [vmem:[#allocation2 + $0x8] sm:$0xff]
        %v1279 = vld [vmem:[#allocation2 + $0x10] sm:$0xff]
        %v1280 = vld [vmem:[#allocation2 + $0x18] sm:$0xff]
        %v1281 = vld [vmem:[%s7] sm:$0xff]
        %v1282 = vld [vmem:[%s7 + $0x8] sm:$0xff]
        %v1283 = vld [vmem:[%s7 + $0x10] sm:$0xff]
        %v1284 = vld [vmem:[%s7 + $0x18] sm:$0xff]
        %v1285 = vld [vmem:[%s8] sm:$0xf]
        %v1286 = vld [vmem:[%s8 + $0x4] sm:$0xf]
        %v1287 = vld [vmem:[%s8 + $0x8] sm:$0xf]
        %v1288 = vld [vmem:[%s8 + $0xc] sm:$0xf]
        %v1289 = vld [vmem:[%s9] sm:$0xff]
        %v1290 = vld [vmem:[%s9 + $0x8] sm:$0xff]
        %v1291 = vld [vmem:[%s9 + $0x10] sm:$0xff]
        %v1292 = vld [vmem:[%s9 + $0x18] sm:$0xff]
        %v1293 = vmul.f32 %v1277, %v1281
        %v1294 = vmul.f32 %v1278, %v1282
        %v1295 = vmul.f32 %v1279, %v1283
        %v1296 = vmul.f32 %v1280, %v1284
        %v1297 = vpack.c.bf16 %v1294, %v1293
        %v1298 = vpack.c.bf16 %v1296, %v1295
        %1299 = vxpose.xlu0.c.b16.start [1/8] %v1297, 128
        %1300 = vxpose.xlu0.c.b16.cont [2/8] %v1298, 128
        %1301 = vxpose.xlu0.c.b16.cont [3/8] 0, 128
        %1302 = vxpose.xlu0.c.b16.cont [4/8] 0, 128
        %1303 = vxpose.xlu0.c.b16.cont [5/8] 0, 128
        %1304 = vxpose.xlu0.c.b16.cont [6/8] 0, 128
        %1305 = vxpose.xlu0.c.b16.cont [7/8] 0, 128
        %1306 = vxpose.xlu0.c.b16.end [8/8] 0, 128
        %v1307 = vpop.trf.xlu0
        %v1308 = vpop.trf.xlu0
        %v1309 = vpop.trf.xlu0
        %v1310 = vpop.trf.xlu0
        %v1311 = vpop.trf.xlu0
        %v1312 = vpop.trf.xlu0
        %v1313 = vpop.trf.xlu0
        %v1314 = vpop.trf.xlu0
        %v1319 = vunpack.c.l.b16 %v1285
        %v1320 = vunpack.c.l.b16 %v1286
        %v1321 = vunpack.c.l.b16 %v1287
        %v1322 = vunpack.c.l.b16 %v1288
        %v1323 = vpack.c.b16 %v1320, %v1319
        %v1324 = vpack.c.b16 %v1322, %v1321
        %v1328 = vsel %vm467, %v1307, 0
        %v1331 = vsel %vm467, %v1308, 0
        %1333 = vmatprep.subr.bf16.mxu0 0
        %1334 = vmatpush1.bf16.msra.mxu0 0
        %1335 = vmatprep.subr.bf16.mxu0 0
        %1336 = vmatpush1.bf16.msra.mxu0 0
        %1337 = vmatprep.subr.bf16.mxu0 0
        %1338 = vmatpush1.bf16.msra.mxu0 0
        %1339 = vmatprep.subr.bf16.mxu0 0
        %1340 = vmatpush1.bf16.msra.mxu0 0
        %1341 = vmatprep.subr.bf16.mxu0 0
        %1342 = vmatpush1.bf16.msra.mxu0 0
        %1343 = vmatprep.subr.bf16.mxu0 0
        %1344 = vmatpush1.bf16.msra.mxu0 0
        %1345 = vmatprep.subr.bf16.mxu0 0
        %1346 = vmatpush1.bf16.msra.mxu0 %v1324
        %1347 = vmatprep.subr.bf16.mxu0 0
        %1348 = vmatpush1.bf16.msra.mxu0 %v1323
        %1349 = vmatprep.subr.bf16.mxu0 0
        %1350 = vmatpush2.bf16.msra.mxu0 0
        %1351 = vmatprep.subr.bf16.mxu0 0
        %1352 = vmatpush2.bf16.msra.mxu0 0
        %1353 = vmatprep.subr.bf16.mxu0 0
        %1354 = vmatpush2.bf16.msra.mxu0 0
        %1355 = vmatprep.subr.bf16.mxu0 0
        %1356 = vmatpush2.bf16.msra.mxu0 0
        %1357 = vmatprep.subr.bf16.mxu0 0
        %1358 = vmatpush2.bf16.msra.mxu0 0
        %1359 = vmatprep.subr.bf16.mxu0 0
        %1360 = vmatpush2.bf16.msra.mxu0 0
        %1361 = vmatprep.subr.bf16.mxu0 0
        %1362 = vmatpush2.bf16.msra.mxu0 0
        %1363 = vmatprep.subr.bf16.mxu0 0
        %1364 = vmatpush2.bf16.msra.mxu0 0
        %1365 = vmatprep.mubr.bf16.mxu0 0
        %1366 = vmatmul.mubr.bf16.gmra.mxu0 %v1328
        %v1367 = vpop.f32.mrf.mxu0
        %v1368 = vadd.f32 0.0, %v1367
        %v1369 = vpop.f32.mrf.mxu0
        %v1370 = vpop.f32.mrf.mxu0
        %v1371 = vadd.f32 0.0, %v1370
        %v1372 = vpop.f32.mrf.mxu0
        %1373 = vmatprep.mubr.bf16.mxu0 0
        %1374 = vmatmul.mubr.bf16.gmra.mxu0 %v1331
        %v1375 = vpop.f32.mrf.mxu0
        %v1376 = vadd.f32 0.0, %v1375
        %v1377 = vpop.f32.mrf.mxu0
        %v1378 = vpop.f32.mrf.mxu0
        %v1379 = vadd.f32 0.0, %v1378
        %v1380 = vpop.f32.mrf.mxu0
        %1381 = vdwg.mxu0
        %v1382 = vpack.c.bf16 %v1290, %v1289
        %v1383 = vpack.c.bf16 %v1292, %v1291
        %1384 = vmatprep.subr.bf16.mxu0 0
        %1385 = vmatpush1.bf16.msra.mxu0 0
        %1386 = vmatprep.subr.bf16.mxu0 0
        %1387 = vmatpush1.bf16.msra.mxu0 0
        %1388 = vmatprep.subr.bf16.mxu0 0
        %1389 = vmatpush1.bf16.msra.mxu0 0
        %1390 = vmatprep.subr.bf16.mxu0 0
        %1391 = vmatpush1.bf16.msra.mxu0 0
        %1392 = vmatprep.subr.bf16.mxu0 0
        %1393 = vmatpush1.bf16.msra.mxu0 0
        %1394 = vmatprep.subr.bf16.mxu0 0
        %1395 = vmatpush1.bf16.msra.mxu0 0
        %1396 = vmatprep.subr.bf16.mxu0 0
        %1397 = vmatpush1.bf16.msra.mxu0 %v1383
        %1398 = vmatprep.subr.bf16.mxu0 0
        %1399 = vmatpush1.bf16.msra.mxu0 %v1382
        %1400 = vmatprep.subr.bf16.mxu0 0
        %1401 = vmatpush2.bf16.msra.mxu0 0
        %1402 = vmatprep.subr.bf16.mxu0 0
        %1403 = vmatpush2.bf16.msra.mxu0 0
        %1404 = vmatprep.subr.bf16.mxu0 0
        %1405 = vmatpush2.bf16.msra.mxu0 0
        %1406 = vmatprep.subr.bf16.mxu0 0
        %1407 = vmatpush2.bf16.msra.mxu0 0
        %1408 = vmatprep.subr.bf16.mxu0 0
        %1409 = vmatpush2.bf16.msra.mxu0 0
        %1410 = vmatprep.subr.bf16.mxu0 0
        %1411 = vmatpush2.bf16.msra.mxu0 0
        %1412 = vmatprep.subr.bf16.mxu0 0
        %1413 = vmatpush2.bf16.msra.mxu0 0
        %1414 = vmatprep.subr.bf16.mxu0 0
        %1415 = vmatpush2.bf16.msra.mxu0 0
        %1416 = vmatprep.mubr.bf16.mxu0 0
        %1417 = vmatmul.mubr.bf16.gmra.mxu0 %v1328
        %v1418 = vpop.f32.mrf.mxu0
        %v1419 = vadd.f32 0.0, %v1418
        %v1420 = vpop.f32.mrf.mxu0
        %v1421 = vpop.f32.mrf.mxu0
        %v1422 = vadd.f32 0.0, %v1421
        %v1423 = vpop.f32.mrf.mxu0
        %1424 = vmatprep.mubr.bf16.mxu0 0
        %1425 = vmatmul.mubr.bf16.gmra.mxu0 %v1331
        %v1426 = vpop.f32.mrf.mxu0
        %v1427 = vadd.f32 0.0, %v1426
        %v1428 = vpop.f32.mrf.mxu0
        %v1429 = vpop.f32.mrf.mxu0
        %v1430 = vadd.f32 0.0, %v1429
        %v1431 = vpop.f32.mrf.mxu0
        %1432 = vdwg.mxu0
        %v1433 = vpack.c.bf16 %v1371, %v1368
        %v1434 = vpack.c.bf16 %v1379, %v1376
        %v1435 = vld [vmem:[%s465] sm:$0xff]
        %v1436 = vld [vmem:[%s465 + $0x8] sm:$0xff]
        %v1437 = vld [vmem:[%s465 + $0x10] sm:$0xff]
        %v1438 = vld [vmem:[%s465 + $0x18] sm:$0xff]
        %v1439 = vld [vmem:[%s465 + $0x20] sm:$0xff]
        %v1440 = vld [vmem:[%s465 + $0x28] sm:$0xff]
        %v1441 = vld [vmem:[%s465 + $0x30] sm:$0xff]
        %v1442 = vld [vmem:[%s465 + $0x38] sm:$0xff]
        %v1443 = vld [vmem:[%s10] sm:$0xf]
        %v1444 = vld [vmem:[%s10 + $0x4] sm:$0xf]
        %v1445 = vld [vmem:[%s10 + $0x8] sm:$0xf]
        %v1446 = vld [vmem:[%s10 + $0xc] sm:$0xf]
        %v1447 = vld [vmem:[%s11] sm:$0xff]
        %v1448 = vld [vmem:[%s11 + $0x8] sm:$0xff]
        %v1449 = vld [vmem:[%s11 + $0x10] sm:$0xff]
        %v1450 = vld [vmem:[%s11 + $0x18] sm:$0xff]
        %v1451 = vld [vmem:[%s12] sm:$0xf]
        %v1452 = vld [vmem:[%s12 + $0x4] sm:$0xf]
        %v1453 = vld [vmem:[%s12 + $0x8] sm:$0xf]
        %v1454 = vld [vmem:[%s12 + $0xc] sm:$0xf]
        %v1455 = vld [vmem:[%s13] sm:$0xff]
        %v1456 = vld [vmem:[%s13 + $0x8] sm:$0xff]
        %v1457 = vld [vmem:[%s13 + $0x10] sm:$0xff]
        %v1458 = vld [vmem:[%s13 + $0x18] sm:$0xff]
        %v1459 = vpack.c.bf16 %v1437, %v1435
        %v1460 = vpack.c.bf16 %v1438, %v1436
        %v1461 = vpack.c.bf16 %v1441, %v1439
        %v1462 = vpack.c.bf16 %v1442, %v1440
        %1464 = vset.pattern.permute.xlu0 0
        %1465 = vperm.xlu0 %1464, %v1419
        %v1466 = vpop.permute.xlu0 %1465
        %1469 = vset.pattern.permute.xlu0 0
        %1470 = vperm.xlu0 %1469, %v1422
        %v1471 = vpop.permute.xlu0 %1470
        %1474 = vset.pattern.permute.xlu0 0
        %1475 = vperm.xlu0 %1474, %v1427
        %v1476 = vpop.permute.xlu0 %1475
        %1479 = vset.pattern.permute.xlu0 0
        %1480 = vperm.xlu0 %1479, %v1430
        %v1481 = vpop.permute.xlu0 %1480
        %v1484 = vsel %vm467, %v1433, 0
        %v1487 = vsel %vm467, %v1434, 0
        %1489 = vmatprep.subr.bf16.mxu0 0
        %1490 = vmatpush1.bf16.msra.mxu0 0
        %1491 = vmatprep.subr.bf16.mxu0 0
        %1492 = vmatpush1.bf16.msra.mxu0 0
        %1493 = vmatprep.subr.bf16.mxu0 0
        %1494 = vmatpush1.bf16.msra.mxu0 0
        %1495 = vmatprep.subr.bf16.mxu0 0
        %1496 = vmatpush1.bf16.msra.mxu0 0
        %1497 = vmatprep.subr.bf16.mxu0 0
        %1498 = vmatpush1.bf16.msra.mxu0 0
        %1499 = vmatprep.subr.bf16.mxu0 0
        %1500 = vmatpush1.bf16.msra.mxu0 0
        %1501 = vmatprep.subr.bf16.mxu0 %v1462
        %1502 = vmatpush1.bf16.msra.mxu0 %v1461
        %1503 = vmatprep.subr.bf16.mxu0 %v1460
        %1504 = vmatpush1.bf16.msra.mxu0 %v1459
        %1505 = vmatprep.subr.bf16.mxu0 0
        %1506 = vmatpush2.bf16.msra.mxu0 0
        %1507 = vmatprep.subr.bf16.mxu0 0
        %1508 = vmatpush2.bf16.msra.mxu0 0
        %1509 = vmatprep.subr.bf16.mxu0 0
        %1510 = vmatpush2.bf16.msra.mxu0 0
        %1511 = vmatprep.subr.bf16.mxu0 0
        %1512 = vmatpush2.bf16.msra.mxu0 0
        %1513 = vmatprep.subr.bf16.mxu0 0
        %1514 = vmatpush2.bf16.msra.mxu0 0
        %1515 = vmatprep.subr.bf16.mxu0 0
        %1516 = vmatpush2.bf16.msra.mxu0 0
        %1517 = vmatprep.subr.bf16.mxu0 0
        %1518 = vmatpush2.bf16.msra.mxu0 0
        %1519 = vmatprep.subr.bf16.mxu0 0
        %1520 = vmatpush2.bf16.msra.mxu0 0
        %1521 = vmatprep.mubr.bf16.mxu0 0
        %1522 = vmatmul.mubr.bf16.gmra.mxu0 %v1484
        %v1523 = vpop.f32.mrf.mxu0
        %v1524 = vadd.f32 %v1466, %v1523
        %v1525 = vpop.f32.mrf.mxu0
        %v1526 = vadd.f32 %v1466, %v1525
        %v1527 = vpop.f32.mrf.mxu0
        %v1528 = vadd.f32 %v1471, %v1527
        %v1529 = vpop.f32.mrf.mxu0
        %v1530 = vadd.f32 %v1471, %v1529
        %1531 = vmatprep.mubr.bf16.mxu0 0
        %1532 = vmatmul.mubr.bf16.gmra.mxu0 %v1487
        %v1533 = vpop.f32.mrf.mxu0
        %v1534 = vadd.f32 %v1476, %v1533
        %v1535 = vpop.f32.mrf.mxu0
        %v1536 = vadd.f32 %v1476, %v1535
        %v1537 = vpop.f32.mrf.mxu0
        %v1538 = vadd.f32 %v1481, %v1537
        %v1539 = vpop.f32.mrf.mxu0
        %v1540 = vadd.f32 %v1481, %v1539
        %1541 = vdwg.mxu0
        %v1542 = vadd.f32 %v1524, %v1435
        %v1543 = vadd.f32 %v1526, %v1436
        %v1544 = vadd.f32 %v1528, %v1437
        %v1545 = vadd.f32 %v1530, %v1438
        %v1546 = vadd.f32 %v1534, %v1439
        %v1547 = vadd.f32 %v1536, %v1440
        %v1548 = vadd.f32 %v1538, %v1441
        %v1549 = vadd.f32 %v1540, %v1442
        %v1550 = vpack.c.bf16 %v1544, %v1542
        %v1551 = vpack.c.bf16 %v1545, %v1543
        %v1552 = vpack.c.bf16 %v1548, %v1546
        %v1553 = vpack.c.bf16 %v1549, %v1547
        %1555 = vset.pattern.permute.xlu0 0
        %1556 = vperm.xlu0 %1555, %v1447
        %v1557 = vpop.permute.xlu0 %1556
        %1560 = vset.pattern.permute.xlu0 0
        %1561 = vperm.xlu0 %1560, %v1448
        %v1562 = vpop.permute.xlu0 %1561
        %1565 = vset.pattern.permute.xlu0 0
        %1566 = vperm.xlu0 %1565, %v1449
        %v1567 = vpop.permute.xlu0 %1566
        %1570 = vset.pattern.permute.xlu0 0
        %1571 = vperm.xlu0 %1570, %v1450
        %v1572 = vpop.permute.xlu0 %1571
        %v1578 = vunpack.c.l.b16 %v1443
        %v1579 = vunpack.c.l.b16 %v1444
        %v1580 = vunpack.c.l.b16 %v1445
        %v1581 = vunpack.c.l.b16 %v1446
        %v1582 = vpack.c.b16 %v1579, %v1578
        %v1583 = vpack.c.b16 %v1581, %v1580
        %v1585 = vsel %vm467, %v1582, 0
        %v1588 = vsel %vm467, %v1583, 0
        %1590 = vmatprep.subr.bf16.mxu0 0
        %1591 = vmatpush1.bf16.msra.mxu0 0
        %1592 = vmatprep.subr.bf16.mxu0 0
        %1593 = vmatpush1.bf16.msra.mxu0 0
        %1594 = vmatprep.subr.bf16.mxu0 0
        %1595 = vmatpush1.bf16.msra.mxu0 0
        %1596 = vmatprep.subr.bf16.mxu0 0
        %1597 = vmatpush1.bf16.msra.mxu0 0
        %1598 = vmatprep.subr.bf16.mxu0 0
        %1599 = vmatpush1.bf16.msra.mxu0 0
        %1600 = vmatprep.subr.bf16.mxu0 0
        %1601 = vmatpush1.bf16.msra.mxu0 0
        %1602 = vmatprep.subr.bf16.mxu0 %v1553
        %1603 = vmatpush1.bf16.msra.mxu0 %v1552
        %1604 = vmatprep.subr.bf16.mxu0 %v1551
        %1605 = vmatpush1.bf16.msra.mxu0 %v1550
        %1606 = vmatprep.subr.bf16.mxu0 0
        %1607 = vmatpush2.bf16.msra.mxu0 0
        %1608 = vmatprep.subr.bf16.mxu0 0
        %1609 = vmatpush2.bf16.msra.mxu0 0
        %1610 = vmatprep.subr.bf16.mxu0 0
        %1611 = vmatpush2.bf16.msra.mxu0 0
        %1612 = vmatprep.subr.bf16.mxu0 0
        %1613 = vmatpush2.bf16.msra.mxu0 0
        %1614 = vmatprep.subr.bf16.mxu0 0
        %1615 = vmatpush2.bf16.msra.mxu0 0
        %1616 = vmatprep.subr.bf16.mxu0 0
        %1617 = vmatpush2.bf16.msra.mxu0 0
        %1618 = vmatprep.subr.bf16.mxu0 0
        %1619 = vmatpush2.bf16.msra.mxu0 0
        %1620 = vmatprep.subr.bf16.mxu0 0
        %1621 = vmatpush2.bf16.msra.mxu0 0
        %1622 = vmatprep.mubr.bf16.mxu0 0
        %1623 = vmatmul.mubr.bf16.gmra.mxu0 %v1585
        %v1624 = vpop.f32.mrf.mxu0
        %v1625 = vadd.f32 %v1557, %v1624
        %v1626 = vpop.f32.mrf.mxu0
        %v1627 = vadd.f32 %v1557, %v1626
        %v1628 = vpop.f32.mrf.mxu0
        %v1629 = vadd.f32 %v1562, %v1628
        %v1630 = vpop.f32.mrf.mxu0
        %v1631 = vadd.f32 %v1562, %v1630
        %1632 = vmatprep.mubr.bf16.mxu0 0
        %1633 = vmatmul.mubr.bf16.gmra.mxu0 %v1588
        %v1634 = vpop.f32.mrf.mxu0
        %v1635 = vadd.f32 %v1567, %v1634
        %v1636 = vpop.f32.mrf.mxu0
        %v1637 = vadd.f32 %v1567, %v1636
        %v1638 = vpop.f32.mrf.mxu0
        %v1639 = vadd.f32 %v1572, %v1638
        %v1640 = vpop.f32.mrf.mxu0
        %v1641 = vadd.f32 %v1572, %v1640
        %1642 = vdwg.mxu0
        %v1643 = vmul.f32 %v1625, 0.5
        %v1644 = vmul.f32 %v1627, 0.5
        %v1645 = vmul.f32 %v1629, 0.5
        %v1646 = vmul.f32 %v1631, 0.5
        %v1647 = vmul.f32 %v1635, 0.5
        %v1648 = vmul.f32 %v1637, 0.5
        %v1649 = vmul.f32 %v1639, 0.5
        %v1650 = vmul.f32 %v1641, 0.5
        %v1651 = vmul.f32 %v1625, %v1625
        %v1652 = vmul.f32 %v1627, %v1627
        %v1653 = vmul.f32 %v1629, %v1629
        %v1654 = vmul.f32 %v1631, %v1631
        %v1655 = vmul.f32 %v1635, %v1635
        %v1656 = vmul.f32 %v1637, %v1637
        %v1657 = vmul.f32 %v1639, %v1639
        %v1658 = vmul.f32 %v1641, %v1641
        %v1659 = vmul.f32 %v1651, %v1625
        %v1660 = vmul.f32 %v1652, %v1627
        %v1661 = vmul.f32 %v1653, %v1629
        %v1662 = vmul.f32 %v1654, %v1631
        %v1663 = vmul.f32 %v1655, %v1635
        %v1664 = vmul.f32 %v1656, %v1637
        %v1665 = vmul.f32 %v1657, %v1639
        %v1666 = vmul.f32 %v1658, %v1641
        %v1667 = vmul.f32 %v1659, 0.044715
        %v1668 = vmul.f32 %v1660, 0.044715
        %v1669 = vmul.f32 %v1661, 0.044715
        %v1670 = vmul.f32 %v1662, 0.044715
        %v1671 = vmul.f32 %v1663, 0.044715
        %v1672 = vmul.f32 %v1664, 0.044715
        %v1673 = vmul.f32 %v1665, 0.044715
        %v1674 = vmul.f32 %v1666, 0.044715
        %v1675 = vadd.f32 %v1625, %v1667
        %v1676 = vadd.f32 %v1627, %v1668
        %v1677 = vadd.f32 %v1629, %v1669
        %v1678 = vadd.f32 %v1631, %v1670
        %v1679 = vadd.f32 %v1635, %v1671
        %v1680 = vadd.f32 %v1637, %v1672
        %v1681 = vadd.f32 %v1639, %v1673
        %v1682 = vadd.f32 %v1641, %v1674
        %v1683 = vmul.f32 %v1675, 0.7978846
        %v1684 = vmul.f32 %v1676, 0.7978846
        %v1685 = vmul.f32 %v1677, 0.7978846
        %v1686 = vmul.f32 %v1678, 0.7978846
        %v1687 = vmul.f32 %v1679, 0.7978846
        %v1688 = vmul.f32 %v1680, 0.7978846
        %v1689 = vmul.f32 %v1681, 0.7978846
        %v1690 = vmul.f32 %v1682, 0.7978846
        %v1691 = vtanh.pop %v1683
        %v1692 = vtanh.pop %v1684
        %v1693 = vtanh.pop %v1685
        %v1694 = vtanh.pop %v1686
        %v1695 = vtanh.pop %v1687
        %v1696 = vtanh.pop %v1688
        %v1697 = vtanh.pop %v1689
        %v1698 = vtanh.pop %v1690
        %v1699 = vadd.f32 %v1691, 1.0
        %v1700 = vadd.f32 %v1692, 1.0
        %v1701 = vadd.f32 %v1693, 1.0
        %v1702 = vadd.f32 %v1694, 1.0
        %v1703 = vadd.f32 %v1695, 1.0
        %v1704 = vadd.f32 %v1696, 1.0
        %v1705 = vadd.f32 %v1697, 1.0
        %v1706 = vadd.f32 %v1698, 1.0
        %v1707 = vmul.f32 %v1643, %v1699
        %v1708 = vmul.f32 %v1644, %v1700
        %v1709 = vmul.f32 %v1645, %v1701
        %v1710 = vmul.f32 %v1646, %v1702
        %v1711 = vmul.f32 %v1647, %v1703
        %v1712 = vmul.f32 %v1648, %v1704
        %v1713 = vmul.f32 %v1649, %v1705
        %v1714 = vmul.f32 %v1650, %v1706
        %v1715 = vpack.c.bf16 %v1709, %v1707
        %v1716 = vpack.c.bf16 %v1710, %v1708
        %v1717 = vpack.c.bf16 %v1713, %v1711
        %v1718 = vpack.c.bf16 %v1714, %v1712
        %1720 = vset.pattern.permute.xlu0 0
        %1721 = vperm.xlu0 %1720, %v1455
        %v1722 = vpop.permute.xlu0 %1721
        %1725 = vset.pattern.permute.xlu0 0
        %1726 = vperm.xlu0 %1725, %v1456
        %v1727 = vpop.permute.xlu0 %1726
        %1730 = vset.pattern.permute.xlu0 0
        %1731 = vperm.xlu0 %1730, %v1457
        %v1732 = vpop.permute.xlu0 %1731
        %1735 = vset.pattern.permute.xlu0 0
        %1736 = vperm.xlu0 %1735, %v1458
        %v1737 = vpop.permute.xlu0 %1736
        %v1743 = vunpack.c.l.b16 %v1451
        %v1744 = vunpack.c.l.b16 %v1452
        %v1745 = vunpack.c.l.b16 %v1453
        %v1746 = vunpack.c.l.b16 %v1454
        %v1747 = vpack.c.b16 %v1744, %v1743
        %v1748 = vpack.c.b16 %v1746, %v1745
        %v1750 = vsel %vm467, %v1747, 0
        %v1753 = vsel %vm467, %v1748, 0
        %1755 = vmatprep.subr.bf16.mxu0 0
        %1756 = vmatpush1.bf16.msra.mxu0 0
        %1757 = vmatprep.subr.bf16.mxu0 0
        %1758 = vmatpush1.bf16.msra.mxu0 0
        %1759 = vmatprep.subr.bf16.mxu0 0
        %1760 = vmatpush1.bf16.msra.mxu0 0
        %1761 = vmatprep.subr.bf16.mxu0 0
        %1762 = vmatpush1.bf16.msra.mxu0 0
        %1763 = vmatprep.subr.bf16.mxu0 0
        %1764 = vmatpush1.bf16.msra.mxu0 0
        %1765 = vmatprep.subr.bf16.mxu0 0
        %1766 = vmatpush1.bf16.msra.mxu0 0
        %1767 = vmatprep.subr.bf16.mxu0 %v1718
        %1768 = vmatpush1.bf16.msra.mxu0 %v1717
        %1769 = vmatprep.subr.bf16.mxu0 %v1716
        %1770 = vmatpush1.bf16.msra.mxu0 %v1715
        %1771 = vmatprep.subr.bf16.mxu0 0
        %1772 = vmatpush2.bf16.msra.mxu0 0
        %1773 = vmatprep.subr.bf16.mxu0 0
        %1774 = vmatpush2.bf16.msra.mxu0 0
        %1775 = vmatprep.subr.bf16.mxu0 0
        %1776 = vmatpush2.bf16.msra.mxu0 0
        %1777 = vmatprep.subr.bf16.mxu0 0
        %1778 = vmatpush2.bf16.msra.mxu0 0
        %1779 = vmatprep.subr.bf16.mxu0 0
        %1780 = vmatpush2.bf16.msra.mxu0 0
        %1781 = vmatprep.subr.bf16.mxu0 0
        %1782 = vmatpush2.bf16.msra.mxu0 0
        %1783 = vmatprep.subr.bf16.mxu0 0
        %1784 = vmatpush2.bf16.msra.mxu0 0
        %1785 = vmatprep.subr.bf16.mxu0 0
        %1786 = vmatpush2.bf16.msra.mxu0 0
        %1787 = vmatprep.mubr.bf16.mxu0 0
        %1788 = vmatmul.mubr.bf16.gmra.mxu0 %v1750
        %v1789 = vpop.f32.mrf.mxu0
        %v1790 = vadd.f32 %v1722, %v1789
        %v1791 = vpop.f32.mrf.mxu0
        %v1792 = vadd.f32 %v1722, %v1791
        %v1793 = vpop.f32.mrf.mxu0
        %v1794 = vadd.f32 %v1727, %v1793
        %v1795 = vpop.f32.mrf.mxu0
        %v1796 = vadd.f32 %v1727, %v1795
        %1797 = vmatprep.mubr.bf16.mxu0 0
        %1798 = vmatmul.mubr.bf16.gmra.mxu0 %v1753
        %v1799 = vpop.f32.mrf.mxu0
        %v1800 = vadd.f32 %v1732, %v1799
        %v1801 = vpop.f32.mrf.mxu0
        %v1802 = vadd.f32 %v1732, %v1801
        %v1803 = vpop.f32.mrf.mxu0
        %v1804 = vadd.f32 %v1737, %v1803
        %v1805 = vpop.f32.mrf.mxu0
        %v1806 = vadd.f32 %v1737, %v1805
        %1807 = vdwg.mxu0
        %v1808 = vadd.f32 %v1790, %v1435
        %v1809 = vadd.f32 %v1792, %v1436
        %v1810 = vadd.f32 %v1794, %v1437
        %v1811 = vadd.f32 %v1796, %v1438
        %v1812 = vadd.f32 %v1800, %v1439
        %v1813 = vadd.f32 %v1802, %v1440
        %v1814 = vadd.f32 %v1804, %v1441
        %v1815 = vadd.f32 %v1806, %v1442
        %v1816 = vpack.c.bf16 %v1810, %v1808
        %v1817 = vpack.c.bf16 %v1811, %v1809
        %v1818 = vpack.c.bf16 %v1814, %v1812
        %v1819 = vpack.c.bf16 %v1815, %v1813
        %v1824 = vunpack.c.l.b16 %v1816
        %v1825 = vunpack.c.l.b16 %v1817
        %v1826 = vunpack.c.h.b16 %v1816
        %v1827 = vunpack.c.h.b16 %v1817
        %v1828 = vunpack.c.l.b16 %v1818
        %v1829 = vunpack.c.l.b16 %v1819
        %v1830 = vunpack.c.h.b16 %v1818
        %v1831 = vunpack.c.h.b16 %v1819
        %v1832 = vpack.c.b16 %v1825, %v1824
        %v1833 = vpack.c.b16 %v1827, %v1826
        %v1834 = vpack.c.b16 %v1829, %v1828
        %v1835 = vpack.c.b16 %v1831, %v1830
        %1840 = vst [vmem:[%s460] sm:$0xff] %v1832
        %1841 = vst [vmem:[%s460 + $0x8] sm:$0xff] %v1833
        %1842 = vst [vmem:[%s460 + $0x10] sm:$0xff] %v1834
        %1843 = vst [vmem:[%s460 + $0x18] sm:$0xff] %v1835
        %s1844 = sand.u32 %s335, 1
        %s1845 = scalar_lea.sflag [#allocation4], %s1844
        %s1846 = sand.u32 %s335, 1
        %s1847 = smul.addr %s1846, 32
        %s1848 = scalar_lea.vmem [#allocation3], %s1847
        // Predicated region
        $region77: #{tpu_custom_call.1} parent=75 // pred_check
          %p1849 = pneg %p345
        $region78: #{tpu_custom_call.1} parent=75 // pred_check_branch
          %1851 = sbr.rel (%p1849) target = $region80
        $region79: #{tpu_custom_call.1} parent=75 // pred_region
          %s1853 = ssub.s32 512, 512
          %1854 = vsyncadd %s1845, %s1853
          %s1855 = smul.addr %s28, 8
          %s1856 = smul.addr %s1855, 64
          %s1857 = scalar_lea.hbm %s14, %s1856
          %s1858 = sshll.u32 %s1848, 4
          %s1859 = int_to_ptr.vmem [resolvable:$true] %s1858
          %1864 = dma.vmem_to_hbm [thread:$0]  %s1859, 512, %s1857, %s1845, 128, 128, 8
        $region80: #{tpu_custom_call.1} parent=75 // pred_fallthru
          _
      $region76: #{tpu_custom_call.1} parent=5 // pred_fallthru
        _
      %p1865 = scmp.le.s32.totalorder 2, %s23
      // Predicated region
      $region81: #{tpu_custom_call.1} parent=5 // pred_check
        %p1866 = pneg %p1865
      $region82: #{tpu_custom_call.1} parent=5 // pred_check_branch
        %1868 = sbr.rel (%p1866) target = $region84
      $region83: #{tpu_custom_call.1} parent=5 // pred_region
        %s1869 = ssub.s32 %s23, 2
        // Predicated region
        $region85: #{tpu_custom_call.1} parent=83 // pred_check
          %p1870 = pneg %p351
        $region86: #{tpu_custom_call.1} parent=83 // pred_check_branch
          %1872 = sbr.rel (%p1870) target = $region88
        $region87: #{tpu_custom_call.1} parent=83 // pred_region
          %s1873 = sand.u32 %s336, 1
          %s1874 = scalar_lea.sflag [#allocation4], %s1873
          %s1875 = sand.u32 %s336, 1
          %s1876 = smul.addr %s1875, 32
          %s1877 = scalar_lea.vmem [#allocation3], %s1876
          %1878 = dma.done %s1874, 512
        $region88: #{tpu_custom_call.1} parent=83 // pred_fallthru
          _
      $region84: #{tpu_custom_call.1} parent=5 // pred_fallthru
        _
    $region6: #{tpu_custom_call.1} parent=1 // loop_footer
      %s27 = sadd.s32 1, %s23
    $region7: #{tpu_custom_call.1} parent=1 // loop_footer_branch
      %22 = sbr.rel target = $region3
    $region8: #{tpu_custom_call.1} parent=1 // loop_exit
      _
    %1879 = vsyncpa [#allocation4], 1
    %s1880 = scalar_lea.sflag [#allocation4], 1
    %1881 = vsyncpa %s1880, 1

</llo_original>
